<compile_context>
chip_gen: v7x
topology: tpu7x:2x2x1
jax: 0.10.0
libtpu: 0.0.40
codegen_flags: <defaults>
</compile_context>

<pallas_src>
import functools

import jax
import jax.numpy as jnp
from jax.experimental import pallas as pl
from jax.experimental.pallas import tpu as pltpu


def _round_up(x, m):
    return ((x + m - 1) // m) * m


def _device_defaults():
    """Per-generation defaults: (tn, vmem_limit_bytes, bf16_activations, is_v7)."""
    kind = ""
    try:
        kind = jax.devices()[0].device_kind.lower()
    except Exception:
        pass
    is_v5 = "v5" in kind
    is_v7 = "v7" in kind
    # v6e/v7x have a bf16 EUP path -> bf16 tanh halves the binding EUP slot.
    # v5e has no bf16 VPU/EUP, so activations stay in f32 there.
    bf16_act = not is_v5
    if is_v7:
        # 64 MiB physical VMEM per TC: tn=1024 keeps the (tn,1024) f32 z3 at 4 MiB.
        return 1024, 32 * 1024 * 1024, bf16_act, True
    if is_v5 or "v6" in kind:
        # 128 MiB physical VMEM: large tiles amortize per-grid-step overhead.
        return 2048, 96 * 1024 * 1024, bf16_act, False
    return 1024, 64 * 1024 * 1024, bf16_act, False


def _pointnetfeat_kernel(x_ref, w1_ref, b1_ref, w11_ref, b11_ref,
                         w2_ref, b2_ref, w3_ref, b3_ref,
                         gmax_ref, pf_ref, *, act_dtype):
    n = pl.program_id(2)

    # First point tile of this (batch, split): init the running max to -inf.
    @pl.when(n == 0)
    def _():
        gmax_ref[...] = jnp.full(gmax_ref.shape, -jnp.inf, dtype=gmax_ref.dtype)

    x = x_ref[0]                                     # (tn, 2) f32, NWC tile

    # Layer 1 (2 -> 64): K=2 would waste an MXU pass -> two VPU FMAs.
    # TODO(synk): could be moved onto the idle MXU to free VPU/XLU slots (minor).
    w1 = w1_ref[...]                                 # (2, 64) f32
    z1 = x[:, 0:1] * w1[0:1, :] + x[:, 1:2] * w1[1:2, :] + b1_ref[...]
    # bf16 tanh on v6e/v7x (EUP is the binding slot there); f32 on v5e.
    h1 = jnp.tanh(z1.astype(act_dtype))              # (tn, 64)

    # Layers 2-3 on the MXU (bf16 inputs, f32 accumulation); activations emitted in
    # act_dtype so they feed the next matmul without an extra cast.
    h11 = jnp.tanh((jnp.dot(h1.astype(jnp.bfloat16), w11_ref[...],
                            preferred_element_type=jnp.float32)
                    + b11_ref[...]).astype(act_dtype))          # (tn, 64)  pointfeat
    h2 = jnp.tanh((jnp.dot(h11.astype(jnp.bfloat16), w2_ref[...],
                           preferred_element_type=jnp.float32)
                   + b2_ref[...]).astype(act_dtype))            # (tn, 128)

    # Layer 4 (128 -> 1024): NO bias add and NO tanh on the (tn, 1024) tensor:
    #   max_n(h2 @ w3 + b3) == max_n(h2 @ w3) + b3   (b3 constant per channel)
    #   max_n(tanh(z))      == tanh(max_n(z))        (tanh strictly increasing)
    # Both are folded into the final (1, 1024) max below, saving full VPU/EUP
    # passes over the 4-8 MiB per-tile intermediate.
    z3 = jnp.dot(h2.astype(jnp.bfloat16), w3_ref[...],
                 preferred_element_type=jnp.float32)            # (tn, 1024)

    tile_max = jnp.max(z3, axis=0, keepdims=True)               # (1, 1024)
    gmax_ref[0] = jnp.maximum(gmax_ref[0], tile_max)

    # pointfeat tile, stored in bf16 (halves pf HBM writeback, ~97% of kernel
    # output bytes; the bf16 value already exists for the next matmul).
    # TODO(synk): a lane-dense (transposed / 128-lane packed) pf layout would also
    # remove the remaining masked 64-lane vst.msk stores.
    pf_ref[0] = h11.astype(pf_ref.dtype)

    # Last point tile: fold the deferred bias + activation into the global max.
    @pl.when(n == pl.num_programs(2) - 1)
    def _():
        gmax_ref[0] = jnp.tanh(gmax_ref[0] + b3_ref[...])


def pointnetfeat_pallas(x_ncw, params, *, tn=None, n_splits=None,
                        bf16_act=None, vmem_limit_bytes=None):
    """x_ncw: (B, 2, N) float32. Returns (B, 1088, N) float32 (torch NCW layout)."""
    B, Cin, N = x_ncw.shape
    assert Cin == 2
    w1, b1, w11, b11, w2, b2, w3, b3 = params

    d_tn, d_vmem, d_bf16, is_v7 = _device_defaults()
    if tn is None:
        tn = d_tn
    if vmem_limit_bytes is None:
        vmem_limit_bytes = d_vmem
    if bf16_act is None:
        bf16_act = d_bf16

    # Point-tile size: multiple of 128, capped so tiny N does not over-pad.
    tn = max(128, min(_round_up(tn, 128), _round_up(N, 128)))

    # v7x has 2 TensorCores; with a single batch element, split the point axis over
    # a second "parallel" grid axis so both cores stay busy.  Partial maxes are
    # combined in the wrapper (valid even after the in-kernel tanh: tanh is monotone).
    if n_splits is None:
        n_splits = 2 if (is_v7 and B == 1 and N > tn) else 1
    n_splits = max(1, min(n_splits, max(1, _round_up(N, tn) // tn)))

    n_pad = _round_up(N, tn * n_splits)
    nt_per = n_pad // (tn * n_splits)

    # Relayout the tiny (B*N*2) input to NWC so every 1x1 conv is a
    # (tn, Cin) @ (Cin, Cout) matmul with points on the sublane axis.
    # EDGE-pad the ragged tail with copies of the last point: duplicates cannot
    # change the global max, so the kernel needs no per-tile iota/select mask.
    x_nwc = jnp.transpose(x_ncw, (0, 2, 1)).astype(jnp.float32)
    if n_pad != N:
        x_nwc = jnp.pad(x_nwc, ((0, 0), (0, n_pad - N), (0, 0)), mode="edge")

    # bf16 weights for the MXU layers (f32 accumulation in-kernel); layer-1
    # weights and all biases stay f32.
    w11b = w11.astype(jnp.bfloat16)
    w2b = w2.astype(jnp.bfloat16)
    w3b = w3.astype(jnp.bfloat16)

    act_dtype = jnp.bfloat16 if bf16_act else jnp.float32
    kernel = functools.partial(_pointnetfeat_kernel, act_dtype=act_dtype)

    flops = 2 * B * n_pad * (2 * 64 + 64 * 64 + 64 * 128 + 128 * 1024)
    transcendentals = B * n_pad * (64 + 64 + 128) + B * n_splits * 1024
    bytes_accessed = (4 * B * n_pad * 2                   # x in (f32)
                      + 2 * B * n_pad * 64                # pointfeat out (bf16)
                      + 4 * B * n_splits * 1024           # gmax out (f32)
                      + 2 * (64 * 64 + 64 * 128 + 128 * 1024)   # bf16 weights
                      + 4 * (2 * 64 + 64 + 64 + 128 + 1024))    # f32 w1 + biases

    # TODO(synk): constant weight/bias blocks could use pipeline_mode=pl.Buffered(1)
    # to skip double-buffering (~0.5 MiB of VMEM headroom; matters most on v7x).
    def full(a):
        return pl.BlockSpec(a.shape, lambda b, s, n: (0,) * a.ndim)

    pt_idx = lambda b, s, n: (b, s * nt_per + n, 0)

    gmax, pf_nwc = pl.pallas_call(
        kernel,
        out_shape=(
            jax.ShapeDtypeStruct((B * n_splits, 1, 1024), jnp.float32),  # tanh(max+b3)
            jax.ShapeDtypeStruct((B, n_pad, 64), jnp.bfloat16),          # pointfeat NWC
        ),
        grid=(B, n_splits, nt_per),
        in_specs=[
            pl.BlockSpec((1, tn, 2), pt_idx),
            full(w1), full(b1),
            full(w11b), full(b11),
            full(w2b), full(b2),
            full(w3b), full(b3),
        ],
        out_specs=(
            pl.BlockSpec((1, 1, 1024), lambda b, s, n: (b * n_splits + s, 0, 0)),
            pl.BlockSpec((1, tn, 64), pt_idx),
        ),
        compiler_params=pltpu.CompilerParams(
            dimension_semantics=("parallel", "parallel", "arbitrary"),
            vmem_limit_bytes=vmem_limit_bytes),
        cost_estimate=pl.CostEstimate(flops=flops,
                                      transcendentals=transcendentals,
                                      bytes_accessed=bytes_accessed),
    )(x_nwc, w1, b1, w11b, b11, w2b, b2, w3b, b3)

    # Assemble the module's (B, 1088, N) NCW output.  gmax is 1024 floats per
    # (batch, split) and pointfeat only 64 channels, so these XLA ops are cheap;
    # the kernel never writes the 94%-redundant broadcast of gmax nor transposes
    # the 1088-wide tensor.
    g = jnp.max(gmax.reshape(B, n_splits, 1024), axis=1)          # combine splits
    pf_ncw = jnp.transpose(pf_nwc[:, :N, :].astype(jnp.float32), (0, 2, 1))  # (B,64,N)
    g_bcast = jnp.broadcast_to(g[:, :, None], (B, 1024, N))
    return jnp.concatenate([g_bcast, pf_ncw], axis=1)             # (B, 1088, N)


def init_params(key):
    """Deterministic synthetic init mirroring the module's parameter shapes.

    Weights are stored as (Cin, Cout) (transposed PyTorch Conv1d weight with the
    size-1 kernel dim squeezed). Xavier-normal weights, unit-normal biases."""
    dims = [(2, 64), (64, 64), (64, 128), (128, 1024)]
    params = []
    for (cin, cout) in dims:
        key, kw, kb = jax.random.split(key, 3)
        std = (2.0 / (cin + cout)) ** 0.5
        w = std * jax.random.normal(kw, (cin, cout), dtype=jnp.float32)
        b = jax.random.normal(kb, (1, cout), dtype=jnp.float32)
        params += [w, b]
    return tuple(params)


def pointnetfeat_ref(x_ncw, params):
    """Pure-JAX f32 reference (same math as the torch module)."""
    w1, b1, w11, b11, w2, b2, w3, b3 = params
    x = jnp.transpose(x_ncw, (0, 2, 1))                     # (B, N, 2)
    h1 = jnp.tanh(x @ w1 + b1)
    h11 = jnp.tanh(h1 @ w11 + b11)
    h2 = jnp.tanh(h11 @ w2 + b2)
    h3 = jnp.tanh(h2 @ w3 + b3)                             # (B, N, 1024)
    g = jnp.max(h3, axis=1, keepdims=True)                  # (B, 1, 1024)
    g = jnp.broadcast_to(g, h3.shape)
    out = jnp.concatenate([g, h11], axis=-1)                # (B, N, 1088)
    return jnp.transpose(out, (0, 2, 1))                    # (B, 1088, N)


if __name__ == "__main__":
    key = jax.random.PRNGKey(0)
    key, kx1, kx2 = jax.random.split(key, 3)
    params = init_params(key)

    # Small demo shapes.  tn=128 forces multiple point tiles so the running-max
    # accumulation path is exercised.
    B, N = 2, 256
    x = jax.random.normal(kx1, (B, 2, N), dtype=jnp.float32)   # PyTorch NCW input

    fwd = jax.jit(lambda xx, pp: pointnetfeat_pallas(xx, pp, tn=128))
    out = jax.block_until_ready(fwd(x, params))
    ref = pointnetfeat_ref(x, params)
    assert out.shape == (B, 1088, N), out.shape
    # bf16 MXU matmuls / bf16 activations / bf16 pointfeat vs f32 reference.
    assert jnp.allclose(out, ref, atol=4e-2, rtol=4e-2), "mismatch (tiled path)"

    # Ragged N + explicit 2-way point split (v7x-style): the edge-padded tail must
    # not change the max and the two partial maxes must combine correctly.
    N2 = 200
    x2 = jax.random.normal(kx2, (B, 2, N2), dtype=jnp.float32)
    out2 = jax.block_until_ready(
        pointnetfeat_pallas(x2, params, tn=128, n_splits=2))
    ref2 = pointnetfeat_ref(x2, params)
    assert out2.shape == (B, 1088, N2), out2.shape
    assert jnp.allclose(out2, ref2, atol=4e-2, rtol=4e-2), "mismatch (ragged/split)"

    print("KERNEL_OK")
</pallas_src>

<mosaic_0001>
module attributes {stable_mosaic.version = 11 : i64} {
  func.func @_pointnetfeat_kernel(%arg0: i32, %arg1: i32, %arg2: i32, %arg3: memref<1x128x2xf32, #tpu.memory_space<vmem>>, %arg4: memref<2x64xf32, #tpu.memory_space<vmem>>, %arg5: memref<1x64xf32, #tpu.memory_space<vmem>>, %arg6: memref<64x64xbf16, #tpu.memory_space<vmem>>, %arg7: memref<1x64xf32, #tpu.memory_space<vmem>>, %arg8: memref<64x128xbf16, #tpu.memory_space<vmem>>, %arg9: memref<1x128xf32, #tpu.memory_space<vmem>>, %arg10: memref<128x1024xbf16, #tpu.memory_space<vmem>>, %arg11: memref<1x1024xf32, #tpu.memory_space<vmem>>, %arg12: memref<1x1x1024xf32, #tpu.memory_space<vmem>>, %arg13: memref<1x128x64xbf16, #tpu.memory_space<vmem>>) attributes {dimension_semantics = [#tpu.dimension_semantics<parallel>, #tpu.dimension_semantics<parallel>, #tpu.dimension_semantics<arbitrary>], iteration_bounds = array<i64: 2, 1, 2>, scalar_prefetch = 0 : i64, scratch_operands = 0 : i64, tpu.core_type = #tpu.core_type<tc>, window_params = [{transform_indices = @transform_0, window_bounds = array<i64: 1, 128, 2>}, {pipeline_mode = #tpu.pipeline_mode<synchronous>, transform_indices = @transform_1, window_bounds = array<i64: 2, 64>}, {pipeline_mode = #tpu.pipeline_mode<synchronous>, transform_indices = @transform_2, window_bounds = array<i64: 1, 64>}, {pipeline_mode = #tpu.pipeline_mode<synchronous>, transform_indices = @transform_3, window_bounds = array<i64: 64, 64>}, {pipeline_mode = #tpu.pipeline_mode<synchronous>, transform_indices = @transform_4, window_bounds = array<i64: 1, 64>}, {pipeline_mode = #tpu.pipeline_mode<synchronous>, transform_indices = @transform_5, window_bounds = array<i64: 64, 128>}, {pipeline_mode = #tpu.pipeline_mode<synchronous>, transform_indices = @transform_6, window_bounds = array<i64: 1, 128>}, {pipeline_mode = #tpu.pipeline_mode<synchronous>, transform_indices = @transform_7, window_bounds = array<i64: 128, 1024>}, {pipeline_mode = #tpu.pipeline_mode<synchronous>, transform_indices = @transform_8, window_bounds = array<i64: 1, 1024>}, {transform_indices = @transform_9, window_bounds = array<i64: 1, 1, 1024>}, {transform_indices = @transform_10, window_bounds = array<i64: 1, 128, 64>}]} {
    %c0_i32 = arith.constant 0 : i32
    %0 = arith.cmpi eq, %arg2, %c0_i32 : i32
    %1 = arith.extui %0 : i1 to i32
    %c0_i32_0 = arith.constant 0 : i32
    %2 = arith.cmpi ne, %1, %c0_i32_0 : i32
    scf.if %2 {
      %cst_30 = arith.constant 0xFF800000 : f32
      %52 = vector.broadcast %cst_30 : f32 to vector<1x1x1024xf32>
      %c0_31 = arith.constant 0 : index
      %c0_32 = arith.constant 0 : index
      %c0_33 = arith.constant 0 : index
      %53 = vector.load %arg12[%c0_31, %c0_32, %c0_33] : memref<1x1x1024xf32, #tpu.memory_space<vmem>>, vector<1x1x1024xf32>
      tpu.vector_store %arg12[%c0_31, %c0_32, %c0_33], %52 {strides = array<i32>} : memref<1x1x1024xf32, #tpu.memory_space<vmem>>, vector<1x1x1024xf32>,
    } else {
    }
    %c0 = arith.constant 0 : index
    %c0_1 = arith.constant 0 : index
    %c0_2 = arith.constant 0 : index
    %3 = vector.load %arg3[%c0, %c0_1, %c0_2] : memref<1x128x2xf32, #tpu.memory_space<vmem>>, vector<1x128x2xf32>
    %4 = vector.shape_cast %3 : vector<1x128x2xf32> to vector<128x2xf32>
    %c0_3 = arith.constant 0 : index
    %c0_4 = arith.constant 0 : index
    %5 = vector.load %arg4[%c0_3, %c0_4] : memref<2x64xf32, #tpu.memory_space<vmem>>, vector<2x64xf32>
    %6 = vector.extract_strided_slice %4 {offsets = [0, 0], sizes = [128, 1], strides = [1, 1]} : vector<128x2xf32> to vector<128x1xf32>
    %7 = vector.extract_strided_slice %5 {offsets = [0, 0], sizes = [1, 64], strides = [1, 1]} : vector<2x64xf32> to vector<1x64xf32>
    %8 = vector.broadcast %6 : vector<128x1xf32> to vector<128x64xf32>
    %9 = vector.broadcast %7 : vector<1x64xf32> to vector<128x64xf32>
    %10 = arith.mulf %8, %9 : vector<128x64xf32>
    %11 = vector.extract_strided_slice %4 {offsets = [0, 1], sizes = [128, 1], strides = [1, 1]} : vector<128x2xf32> to vector<128x1xf32>
    %12 = vector.extract_strided_slice %5 {offsets = [1, 0], sizes = [1, 64], strides = [1, 1]} : vector<2x64xf32> to vector<1x64xf32>
    %13 = vector.broadcast %11 : vector<128x1xf32> to vector<128x64xf32>
    %14 = vector.broadcast %12 : vector<1x64xf32> to vector<128x64xf32>
    %15 = arith.mulf %13, %14 : vector<128x64xf32>
    %16 = arith.addf %10, %15 : vector<128x64xf32>
    %c0_5 = arith.constant 0 : index
    %c0_6 = arith.constant 0 : index
    %17 = vector.load %arg5[%c0_5, %c0_6] : memref<1x64xf32, #tpu.memory_space<vmem>>, vector<1x64xf32>
    %18 = vector.broadcast %17 : vector<1x64xf32> to vector<128x64xf32>
    %19 = arith.addf %16, %18 : vector<128x64xf32>
    %20 = arith.truncf %19 : vector<128x64xf32> to vector<128x64xbf16>
    %21 = math.tanh %20 : vector<128x64xbf16>
    %c0_7 = arith.constant 0 : index
    %c0_8 = arith.constant 0 : index
    %22 = vector.load %arg6[%c0_7, %c0_8] : memref<64x64xbf16, #tpu.memory_space<vmem>>, vector<64x64xbf16>
    %cst = arith.constant dense<0.000000e+00> : vector<128x64xf32>
    %23 = tpu.matmul %21, %22, %cst {dimension_numbers = #tpu.dot_dimension_numbers<[1], [0], [0], [1], [0, 0, 1, 1], [], []>} : vector<128x64xbf16>, vector<64x64xbf16>, vector<128x64xf32> -> vector<128x64xf32>
    %c0_9 = arith.constant 0 : index
    %c0_10 = arith.constant 0 : index
    %24 = vector.load %arg7[%c0_9, %c0_10] : memref<1x64xf32, #tpu.memory_space<vmem>>, vector<1x64xf32>
    %25 = vector.broadcast %24 : vector<1x64xf32> to vector<128x64xf32>
    %26 = arith.addf %23, %25 : vector<128x64xf32>
    %27 = arith.truncf %26 : vector<128x64xf32> to vector<128x64xbf16>
    %28 = math.tanh %27 : vector<128x64xbf16>
    %c0_11 = arith.constant 0 : index
    %c0_12 = arith.constant 0 : index
    %29 = vector.load %arg8[%c0_11, %c0_12] : memref<64x128xbf16, #tpu.memory_space<vmem>>, vector<64x128xbf16>
    %cst_13 = arith.constant dense<0.000000e+00> : vector<128x128xf32>
    %30 = tpu.matmul %28, %29, %cst_13 {dimension_numbers = #tpu.dot_dimension_numbers<[1], [0], [0], [1], [0, 0, 1, 1], [], []>} : vector<128x64xbf16>, vector<64x128xbf16>, vector<128x128xf32> -> vector<128x128xf32>
    %c0_14 = arith.constant 0 : index
    %c0_15 = arith.constant 0 : index
    %31 = vector.load %arg9[%c0_14, %c0_15] : memref<1x128xf32, #tpu.memory_space<vmem>>, vector<1x128xf32>
    %32 = vector.broadcast %31 : vector<1x128xf32> to vector<128x128xf32>
    %33 = arith.addf %30, %32 : vector<128x128xf32>
    %34 = arith.truncf %33 : vector<128x128xf32> to vector<128x128xbf16>
    %35 = math.tanh %34 : vector<128x128xbf16>
    %c0_16 = arith.constant 0 : index
    %c0_17 = arith.constant 0 : index
    %36 = vector.load %arg10[%c0_16, %c0_17] : memref<128x1024xbf16, #tpu.memory_space<vmem>>, vector<128x1024xbf16>
    %cst_18 = arith.constant dense<0.000000e+00> : vector<128x1024xf32>
    %37 = tpu.matmul %35, %36, %cst_18 {dimension_numbers = #tpu.dot_dimension_numbers<[1], [0], [0], [1], [0, 0, 1, 1], [], []>} : vector<128x128xbf16>, vector<128x1024xbf16>, vector<128x1024xf32> -> vector<128x1024xf32>
    %cst_19 = arith.constant dense<0xFF800000> : vector<1024xf32>
    %38 = vector.multi_reduction <maximumf>, %37, %cst_19 [0] : vector<128x1024xf32> to vector<1024xf32>
    %39 = vector.shape_cast %38 : vector<1024xf32> to vector<1x1024xf32>
    %c0_20 = arith.constant 0 : index
    %c0_21 = arith.constant 0 : index
    %c0_22 = arith.constant 0 : index
    %40 = vector.load %arg12[%c0_20, %c0_21, %c0_22] : memref<1x1x1024xf32, #tpu.memory_space<vmem>>, vector<1x1x1024xf32>
    %41 = vector.shape_cast %40 : vector<1x1x1024xf32> to vector<1x1024xf32>
    %42 = arith.maximumf %41, %39 : vector<1x1024xf32>
    %c0_23 = arith.constant 0 : index
    %c0_24 = arith.constant 0 : index
    %c0_25 = arith.constant 0 : index
    %43 = vector.load %arg12[%c0_23, %c0_24, %c0_25] : memref<1x1x1024xf32, #tpu.memory_space<vmem>>, vector<1x1x1024xf32>
    %44 = vector.shape_cast %43 : vector<1x1x1024xf32> to vector<1x1024xf32>
    %45 = vector.shape_cast %42 : vector<1x1024xf32> to vector<1x1x1024xf32>
    tpu.vector_store %arg12[%c0_23, %c0_24, %c0_25], %45 {strides = array<i32>} : memref<1x1x1024xf32, #tpu.memory_space<vmem>>, vector<1x1x1024xf32>,
    %c0_26 = arith.constant 0 : index
    %c0_27 = arith.constant 0 : index
    %c0_28 = arith.constant 0 : index
    %46 = vector.load %arg13[%c0_26, %c0_27, %c0_28] : memref<1x128x64xbf16, #tpu.memory_space<vmem>>, vector<1x128x64xbf16>
    %47 = vector.shape_cast %46 : vector<1x128x64xbf16> to vector<128x64xbf16>
    %48 = vector.shape_cast %28 : vector<128x64xbf16> to vector<1x128x64xbf16>
    tpu.vector_store %arg13[%c0_26, %c0_27, %c0_28], %48 {strides = array<i32>} : memref<1x128x64xbf16, #tpu.memory_space<vmem>>, vector<1x128x64xbf16>,
    %c1_i32 = arith.constant 1 : i32
    %49 = arith.cmpi eq, %arg2, %c1_i32 : i32
    %50 = arith.extui %49 : i1 to i32
    %c0_i32_29 = arith.constant 0 : i32
    %51 = arith.cmpi ne, %50, %c0_i32_29 : i32
    scf.if %51 {
      %c0_30 = arith.constant 0 : index
      %c0_31 = arith.constant 0 : index
      %c0_32 = arith.constant 0 : index
      %52 = vector.load %arg12[%c0_30, %c0_31, %c0_32] : memref<1x1x1024xf32, #tpu.memory_space<vmem>>, vector<1x1x1024xf32>
      %53 = vector.shape_cast %52 : vector<1x1x1024xf32> to vector<1x1024xf32>
      %c0_33 = arith.constant 0 : index
      %c0_34 = arith.constant 0 : index
      %54 = vector.load %arg11[%c0_33, %c0_34] : memref<1x1024xf32, #tpu.memory_space<vmem>>, vector<1x1024xf32>
      %55 = arith.addf %53, %54 : vector<1x1024xf32>
      %56 = math.tanh %55 : vector<1x1024xf32>
      %c0_35 = arith.constant 0 : index
      %c0_36 = arith.constant 0 : index
      %c0_37 = arith.constant 0 : index
      %57 = vector.load %arg12[%c0_35, %c0_36, %c0_37] : memref<1x1x1024xf32, #tpu.memory_space<vmem>>, vector<1x1x1024xf32>
      %58 = vector.shape_cast %57 : vector<1x1x1024xf32> to vector<1x1024xf32>
      %59 = vector.shape_cast %56 : vector<1x1024xf32> to vector<1x1x1024xf32>
      tpu.vector_store %arg12[%c0_35, %c0_36, %c0_37], %59 {strides = array<i32>} : memref<1x1x1024xf32, #tpu.memory_space<vmem>>, vector<1x1x1024xf32>,
    } else {
    }
    return
  }
  func.func @transform_0(%arg0: i32, %arg1: i32, %arg2: i32) -> (i32, i32, i32) {
    %c2_i32 = arith.constant 2 : i32
    %0 = arith.muli %arg1, %c2_i32 : i32
    %1 = arith.addi %0, %arg2 : i32
    %c0_i32 = arith.constant 0 : i32
    %c0_i32_0 = arith.constant 0 : i32
    return %arg0, %1, %c0_i32 : i32, i32, i32
  }
  func.func @transform_1(%arg0: i32, %arg1: i32, %arg2: i32) -> (i32, i32) {
    %c0_i32 = arith.constant 0 : i32
    %c0_i32_0 = arith.constant 0 : i32
    %c0_i32_1 = arith.constant 0 : i32
    return %c0_i32, %c0_i32_0 : i32, i32
  }
  func.func @transform_2(%arg0: i32, %arg1: i32, %arg2: i32) -> (i32, i32) {
    %c0_i32 = arith.constant 0 : i32
    %c0_i32_0 = arith.constant 0 : i32
    %c0_i32_1 = arith.constant 0 : i32
    return %c0_i32, %c0_i32_0 : i32, i32
  }
  func.func @transform_3(%arg0: i32, %arg1: i32, %arg2: i32) -> (i32, i32) {
    %c0_i32 = arith.constant 0 : i32
    %c0_i32_0 = arith.constant 0 : i32
    %c0_i32_1 = arith.constant 0 : i32
    return %c0_i32, %c0_i32_0 : i32, i32
  }
  func.func @transform_4(%arg0: i32, %arg1: i32, %arg2: i32) -> (i32, i32) {
    %c0_i32 = arith.constant 0 : i32
    %c0_i32_0 = arith.constant 0 : i32
    %c0_i32_1 = arith.constant 0 : i32
    return %c0_i32, %c0_i32_0 : i32, i32
  }
  func.func @transform_5(%arg0: i32, %arg1: i32, %arg2: i32) -> (i32, i32) {
    %c0_i32 = arith.constant 0 : i32
    %c0_i32_0 = arith.constant 0 : i32
    %c0_i32_1 = arith.constant 0 : i32
    return %c0_i32, %c0_i32_0 : i32, i32
  }
  func.func @transform_6(%arg0: i32, %arg1: i32, %arg2: i32) -> (i32, i32) {
    %c0_i32 = arith.constant 0 : i32
    %c0_i32_0 = arith.constant 0 : i32
    %c0_i32_1 = arith.constant 0 : i32
    return %c0_i32, %c0_i32_0 : i32, i32
  }
  func.func @transform_7(%arg0: i32, %arg1: i32, %arg2: i32) -> (i32, i32) {
    %c0_i32 = arith.constant 0 : i32
    %c0_i32_0 = arith.constant 0 : i32
    %c0_i32_1 = arith.constant 0 : i32
    return %c0_i32, %c0_i32_0 : i32, i32
  }
  func.func @transform_8(%arg0: i32, %arg1: i32, %arg2: i32) -> (i32, i32) {
    %c0_i32 = arith.constant 0 : i32
    %c0_i32_0 = arith.constant 0 : i32
    %c0_i32_1 = arith.constant 0 : i32
    return %c0_i32, %c0_i32_0 : i32, i32
  }
  func.func @transform_9(%arg0: i32, %arg1: i32, %arg2: i32) -> (i32, i32, i32) {
    %c1_i32 = arith.constant 1 : i32
    %0 = arith.muli %arg0, %c1_i32 : i32
    %1 = arith.addi %0, %arg1 : i32
    %c0_i32 = arith.constant 0 : i32
    %c0_i32_0 = arith.constant 0 : i32
    %c0_i32_1 = arith.constant 0 : i32
    return %1, %c0_i32, %c0_i32_0 : i32, i32, i32
  }
  func.func @transform_10(%arg0: i32, %arg1: i32, %arg2: i32) -> (i32, i32, i32) {
    %c2_i32 = arith.constant 2 : i32
    %0 = arith.muli %arg1, %c2_i32 : i32
    %1 = arith.addi %0, %arg2 : i32
    %c0_i32 = arith.constant 0 : i32
    %c0_i32_0 = arith.constant 0 : i32
    return %arg0, %1, %c0_i32 : i32, i32, i32
  }
}

</mosaic_0001>

<llo_original>
// kernel: _lambda_.1
$region0: #{_lambda_.1}
  #allocation0 [shape = 'u32[]', space=smem, size = 0x4, offset = 0x4, fixed_abs, tag = 'smem constant byte address 0x4 - core index']
  #allocation1 [shape = 'u32[144,128]{1,0:T(1,128)}', space=vmem, size = 0x12000, scoped, tag = 'internal scratch']
  %s0 = inlined_call_operand.hbm [shape: f32[2,256,2], index: 0, kind: input, shape index: {}]
  %s1 = inlined_call_operand.hbm [shape: f32[2,64], index: 1, kind: input, shape index: {}]
  %s2 = inlined_call_operand.hbm [shape: f32[1,64], index: 2, kind: input, shape index: {}]
  %s3 = inlined_call_operand.hbm [shape: bf16[64,64], index: 3, kind: input, shape index: {}]
  %s4 = inlined_call_operand.hbm [shape: f32[1,64], index: 4, kind: input, shape index: {}]
  %s5 = inlined_call_operand.hbm [shape: bf16[64,128], index: 5, kind: input, shape index: {}]
  %s6 = inlined_call_operand.hbm [shape: f32[1,128], index: 6, kind: input, shape index: {}]
  %s7 = inlined_call_operand.hbm [shape: bf16[128,1024], index: 7, kind: input, shape index: {}]
  %s8 = inlined_call_operand.hbm [shape: f32[1,1024], index: 8, kind: input, shape index: {}]
  %s9 = inlined_call_operand.hbm [shape: f32[2,1,1024], index: 9, kind: output, shape index: {0}]
  %s10 = inlined_call_operand.hbm [shape: bf16[2,256,64], index: 10, kind: output, shape index: {1}]
  %11 = xla_tuple %s9, %s10
  %s12 = sld [smem:[#allocation0]]
  $region121: #{_lambda_.1} parent=0
    _
  %s14 = ssub.s32 1, %s12
  %s15 = scalar_select 0, %s14, %s12
  $region1: #{_lambda_.1} parent=0
    #allocation2 [shape = 'u8[131072]{0}', space=vmem, size = 0x20000, scoped, tag = 'input window, operand 0']
    #allocation3 [shape = 's32[2]{0}', space=sflag, size = 0x8, scoped, tag = 'scoped memory for _lambda_.1']
    #allocation4 [shape = 's32[2]{0}', space=sflag, size = 0x8, scoped, tag = 'scoped memory for _lambda_.1']
    #allocation5 [shape = 'u8[1024]{0}', space=vmem, size = 0x400, scoped, tag = 'input window, operand 1, single buffered']
    #allocation6 [shape = 's32[1]{0}', space=sflag, size = 0x4, scoped, tag = 'scoped memory for _lambda_.1']
    #allocation7 [shape = 'u8[512]{0}', space=vmem, size = 0x400, scoped, tag = 'input window, operand 2, single buffered']
    #allocation8 [shape = 'u8[16384]{0}', space=vmem, size = 0x4000, scoped, tag = 'input window, operand 3, single buffered']
    #allocation9 [shape = 's32[1]{0}', space=sflag, size = 0x4, scoped, tag = 'scoped memory for _lambda_.1']
    #allocation10 [shape = 'u8[512]{0}', space=vmem, size = 0x400, scoped, tag = 'input window, operand 4, single buffered']
    #allocation11 [shape = 'u8[16384]{0}', space=vmem, size = 0x4000, scoped, tag = 'input window, operand 5, single buffered']
    #allocation12 [shape = 's32[1]{0}', space=sflag, size = 0x4, scoped, tag = 'scoped memory for _lambda_.1']
    #allocation13 [shape = 'u8[512]{0}', space=vmem, size = 0x400, scoped, tag = 'input window, operand 6, single buffered']
    #allocation14 [shape = 'u8[262144]{0}', space=vmem, size = 0x40000, scoped, tag = 'input window, operand 7, single buffered']
    #allocation15 [shape = 's32[1]{0}', space=sflag, size = 0x4, scoped, tag = 'scoped memory for _lambda_.1']
    #allocation16 [shape = 'u8[4096]{0}', space=vmem, size = 0x1000, scoped, tag = 'input window, operand 8, single buffered']
    #allocation17 [shape = 'u8[8192]{0}', space=vmem, size = 0x2000, scoped, tag = 'output window, operand 0']
    #allocation18 [shape = 'u8[65536]{0}', space=vmem, size = 0x10000, scoped, tag = 'output window, operand 1']
    #allocation19 [shape = 's32[2]{0}', space=sflag, size = 0x8, scoped, tag = 'scoped memory for _lambda_.1']
    %16 = vsyncpa [#allocation3], 0
    %s17 = scalar_lea.sflag [#allocation3], 1
    %18 = vsyncpa %s17, 0
    %19 = vsyncpa [#allocation6], 0
    %20 = vsyncpa [#allocation9], 0
    %21 = vsyncpa [#allocation12], 0
    %22 = vsyncpa [#allocation15], 0
    %23 = vsyncpa [#allocation4], 0
    %s24 = scalar_lea.sflag [#allocation4], 1
    %25 = vsyncpa %s24, 0
    %26 = vsyncpa [#allocation19], 0
    %s27 = scalar_lea.sflag [#allocation19], 1
    %28 = vsyncpa %s27, 0
    loop: start=0, step=1, limit=6
    $region2: #{_lambda_.1} parent=1 // loop_pre_header
      _
    $region3: #{_lambda_.1} parent=1 // loop_header
      %s30 = sphi 0, %s34
      %p31 = scmp.ge.s32.totalorder %s30, 6
      %s37 = sphi 0, %s56
      %s38 = sphi 0, %s52
      %s39 = sphi 0, %s48
      %s40 = sphi 0, %s37
      %s41 = sphi 0, %s38
      %s42 = sphi 0, %s39
      %s43 = sphi 0, %s40
      %s44 = sphi 0, %s41
      %s45 = sphi 0, %s42
      %s65 = sphi 0, %s67
      %s68 = sphi 0, %s65
      %s69 = sphi 0, %s68
      %s85 = sphi 0, %s69
      %s89 = sphi 0, %s89
      %s91 = sphi 0, %s89
      %s92 = sphi 0, %s91
      %s106 = sphi 0, %s92
      %s110 = sphi 0, %s110
      %s112 = sphi 0, %s110
      %s113 = sphi 0, %s112
      %s127 = sphi 0, %s113
      %s131 = sphi 0, %s131
      %s133 = sphi 0, %s131
      %s134 = sphi 0, %s133
      %s148 = sphi 0, %s134
      %s152 = sphi 0, %s152
      %s154 = sphi 0, %s152
      %s155 = sphi 0, %s154
      %s169 = sphi 0, %s155
      %s173 = sphi 0, %s173
      %s175 = sphi 0, %s173
      %s176 = sphi 0, %s175
      %s190 = sphi 0, %s176
      %s194 = sphi 0, %s194
      %s196 = sphi 0, %s194
      %s197 = sphi 0, %s196
      %s211 = sphi 0, %s197
      %s215 = sphi 0, %s215
      %s217 = sphi 0, %s215
      %s218 = sphi 0, %s217
      %s232 = sphi 0, %s218
      %s236 = sphi 0, %s236
      %s238 = sphi 0, %s236
      %s239 = sphi 0, %s238
      %s253 = sphi 0, %s239
      %s261 = sphi 0, %s263
      %s264 = sphi 0, %s261
      %s265 = sphi 0, %s264
      %s281 = sphi 0, %s265
      %s293 = sphi 0, %s295
      %s296 = sphi 0, %s293
      %s297 = sphi 0, %s296
      %s313 = sphi 0, %s297
    $region4: #{_lambda_.1} parent=1 // loop_header_branch
      %33 = sbr.rel (%p31) target = $region8
    $region5: #{_lambda_.1} parent=1 // loop_body
      %s35 = ssub.s32 %s30, 1
      %s36 = ssub.s32 %s30, 2
      %s46 = sadd.s32 1, %s39
      %p47 = scmp.ge.s32.totalorder %s46, 2
      %s48 = scalar_select %p47, 0, %s46
      %s49 = sadd.s32 1, %s38
      %s50 = scalar_select %p47, %s49, %s38
      %p51 = scmp.ge.s32.totalorder %s50, 1
      %s52 = scalar_select %p51, 0, %s50
      %s53 = sadd.s32 1, %s37
      %s54 = scalar_select %p51, %s53, %s37
      %p55 = scmp.ge.s32.totalorder %s54, 2
      %s56 = scalar_select %p55, 0, %s54
      %s57 = smul.u32 %s38, 2
      %s58 = sadd.s32 %s57, %s39
      %s59 = smul.u32 %s52, 2
      %s60 = sadd.s32 %s59, %s48
      %s61 = ssub.s32 %s37, %s56
      %s62 = ssub.s32 %s58, %s60
      %s63 = sor.u32 %s61, %s62
      %p64 = scmp.eq.s32.totalorder %s63, 0
      %s66 = sadd.s32 %s65, 1
      %s67 = scalar_select %p64, %s65, %s66
      %p70 = pneg %p64
      %p71 = scmp.eq.s32.totalorder %s30, 3
      %p72 = por %p70, %p71
      %p73 = scmp.ne.s32.totalorder %s65, %s68
      %p74 = scmp.eq.s32.totalorder %s30, 0
      %p75 = por %p73, %p74
      %p76 = scmp.ne.s32.totalorder %s65, %s68
      %p77 = scmp.eq.s32.totalorder %s35, 3
      %p78 = por %p76, %p77
      %p79 = scmp.ne.s32.totalorder %s68, %s69
      %p80 = scmp.eq.s32.totalorder %s35, 0
      %p81 = por %p79, %p80
      %p82 = scmp.ne.s32.totalorder %s68, %s69
      %p83 = scmp.eq.s32.totalorder %s36, 3
      %p84 = por %p82, %p83
      %p86 = scmp.ne.s32.totalorder %s69, %s85
      %p87 = scmp.eq.s32.totalorder %s36, 0
      %p88 = por %p86, %p87
      %s90 = sadd.s32 %s89, 1
      %p93 = scmp.eq.s32.totalorder %s30, 3
      %p94 = scmp.ne.s32.totalorder %s89, %s91
      %p95 = scmp.eq.s32.totalorder %s30, 0
      %p96 = por %p94, %p95
      %p97 = scmp.ne.s32.totalorder %s89, %s91
      %p98 = scmp.eq.s32.totalorder %s35, 3
      %p99 = por %p97, %p98
      %p100 = scmp.ne.s32.totalorder %s91, %s92
      %p101 = scmp.eq.s32.totalorder %s35, 0
      %p102 = por %p100, %p101
      %p103 = scmp.ne.s32.totalorder %s91, %s92
      %p104 = scmp.eq.s32.totalorder %s36, 3
      %p105 = por %p103, %p104
      %p107 = scmp.ne.s32.totalorder %s92, %s106
      %p108 = scmp.eq.s32.totalorder %s36, 0
      %p109 = por %p107, %p108
      %s111 = sadd.s32 %s110, 1
      %p114 = scmp.eq.s32.totalorder %s30, 3
      %p115 = scmp.ne.s32.totalorder %s110, %s112
      %p116 = scmp.eq.s32.totalorder %s30, 0
      %p117 = por %p115, %p116
      %p118 = scmp.ne.s32.totalorder %s110, %s112
      %p119 = scmp.eq.s32.totalorder %s35, 3
      %p120 = por %p118, %p119
      %p121 = scmp.ne.s32.totalorder %s112, %s113
      %p122 = scmp.eq.s32.totalorder %s35, 0
      %p123 = por %p121, %p122
      %p124 = scmp.ne.s32.totalorder %s112, %s113
      %p125 = scmp.eq.s32.totalorder %s36, 3
      %p126 = por %p124, %p125
      %p128 = scmp.ne.s32.totalorder %s113, %s127
      %p129 = scmp.eq.s32.totalorder %s36, 0
      %p130 = por %p128, %p129
      %s132 = sadd.s32 %s131, 1
      %p135 = scmp.eq.s32.totalorder %s30, 3
      %p136 = scmp.ne.s32.totalorder %s131, %s133
      %p137 = scmp.eq.s32.totalorder %s30, 0
      %p138 = por %p136, %p137
      %p139 = scmp.ne.s32.totalorder %s131, %s133
      %p140 = scmp.eq.s32.totalorder %s35, 3
      %p141 = por %p139, %p140
      %p142 = scmp.ne.s32.totalorder %s133, %s134
      %p143 = scmp.eq.s32.totalorder %s35, 0
      %p144 = por %p142, %p143
      %p145 = scmp.ne.s32.totalorder %s133, %s134
      %p146 = scmp.eq.s32.totalorder %s36, 3
      %p147 = por %p145, %p146
      %p149 = scmp.ne.s32.totalorder %s134, %s148
      %p150 = scmp.eq.s32.totalorder %s36, 0
      %p151 = por %p149, %p150
      %s153 = sadd.s32 %s152, 1
      %p156 = scmp.eq.s32.totalorder %s30, 3
      %p157 = scmp.ne.s32.totalorder %s152, %s154
      %p158 = scmp.eq.s32.totalorder %s30, 0
      %p159 = por %p157, %p158
      %p160 = scmp.ne.s32.totalorder %s152, %s154
      %p161 = scmp.eq.s32.totalorder %s35, 3
      %p162 = por %p160, %p161
      %p163 = scmp.ne.s32.totalorder %s154, %s155
      %p164 = scmp.eq.s32.totalorder %s35, 0
      %p165 = por %p163, %p164
      %p166 = scmp.ne.s32.totalorder %s154, %s155
      %p167 = scmp.eq.s32.totalorder %s36, 3
      %p168 = por %p166, %p167
      %p170 = scmp.ne.s32.totalorder %s155, %s169
      %p171 = scmp.eq.s32.totalorder %s36, 0
      %p172 = por %p170, %p171
      %s174 = sadd.s32 %s173, 1
      %p177 = scmp.eq.s32.totalorder %s30, 3
      %p178 = scmp.ne.s32.totalorder %s173, %s175
      %p179 = scmp.eq.s32.totalorder %s30, 0
      %p180 = por %p178, %p179
      %p181 = scmp.ne.s32.totalorder %s173, %s175
      %p182 = scmp.eq.s32.totalorder %s35, 3
      %p183 = por %p181, %p182
      %p184 = scmp.ne.s32.totalorder %s175, %s176
      %p185 = scmp.eq.s32.totalorder %s35, 0
      %p186 = por %p184, %p185
      %p187 = scmp.ne.s32.totalorder %s175, %s176
      %p188 = scmp.eq.s32.totalorder %s36, 3
      %p189 = por %p187, %p188
      %p191 = scmp.ne.s32.totalorder %s176, %s190
      %p192 = scmp.eq.s32.totalorder %s36, 0
      %p193 = por %p191, %p192
      %s195 = sadd.s32 %s194, 1
      %p198 = scmp.eq.s32.totalorder %s30, 3
      %p199 = scmp.ne.s32.totalorder %s194, %s196
      %p200 = scmp.eq.s32.totalorder %s30, 0
      %p201 = por %p199, %p200
      %p202 = scmp.ne.s32.totalorder %s194, %s196
      %p203 = scmp.eq.s32.totalorder %s35, 3
      %p204 = por %p202, %p203
      %p205 = scmp.ne.s32.totalorder %s196, %s197
      %p206 = scmp.eq.s32.totalorder %s35, 0
      %p207 = por %p205, %p206
      %p208 = scmp.ne.s32.totalorder %s196, %s197
      %p209 = scmp.eq.s32.totalorder %s36, 3
      %p210 = por %p208, %p209
      %p212 = scmp.ne.s32.totalorder %s197, %s211
      %p213 = scmp.eq.s32.totalorder %s36, 0
      %p214 = por %p212, %p213
      %s216 = sadd.s32 %s215, 1
      %p219 = scmp.eq.s32.totalorder %s30, 3
      %p220 = scmp.ne.s32.totalorder %s215, %s217
      %p221 = scmp.eq.s32.totalorder %s30, 0
      %p222 = por %p220, %p221
      %p223 = scmp.ne.s32.totalorder %s215, %s217
      %p224 = scmp.eq.s32.totalorder %s35, 3
      %p225 = por %p223, %p224
      %p226 = scmp.ne.s32.totalorder %s217, %s218
      %p227 = scmp.eq.s32.totalorder %s35, 0
      %p228 = por %p226, %p227
      %p229 = scmp.ne.s32.totalorder %s217, %s218
      %p230 = scmp.eq.s32.totalorder %s36, 3
      %p231 = por %p229, %p230
      %p233 = scmp.ne.s32.totalorder %s218, %s232
      %p234 = scmp.eq.s32.totalorder %s36, 0
      %p235 = por %p233, %p234
      %s237 = sadd.s32 %s236, 1
      %p240 = scmp.eq.s32.totalorder %s30, 3
      %p241 = scmp.ne.s32.totalorder %s236, %s238
      %p242 = scmp.eq.s32.totalorder %s30, 0
      %p243 = por %p241, %p242
      %p244 = scmp.ne.s32.totalorder %s236, %s238
      %p245 = scmp.eq.s32.totalorder %s35, 3
      %p246 = por %p244, %p245
      %p247 = scmp.ne.s32.totalorder %s238, %s239
      %p248 = scmp.eq.s32.totalorder %s35, 0
      %p249 = por %p247, %p248
      %p250 = scmp.ne.s32.totalorder %s238, %s239
      %p251 = scmp.eq.s32.totalorder %s36, 3
      %p252 = por %p250, %p251
      %p254 = scmp.ne.s32.totalorder %s239, %s253
      %p255 = scmp.eq.s32.totalorder %s36, 0
      %p256 = por %p254, %p255
      %s257 = sadd.s32 %s37, %s38
      %s258 = sadd.s32 %s56, %s52
      %s259 = ssub.s32 %s257, %s258
      %p260 = scmp.eq.s32.totalorder %s259, 0
      %s262 = sadd.s32 %s261, 1
      %s263 = scalar_select %p260, %s261, %s262
      %p266 = pneg %p260
      %p267 = scmp.eq.s32.totalorder %s30, 3
      %p268 = por %p266, %p267
      %p269 = scmp.ne.s32.totalorder %s261, %s264
      %p270 = scmp.eq.s32.totalorder %s30, 0
      %p271 = por %p269, %p270
      %p272 = scmp.ne.s32.totalorder %s261, %s264
      %p273 = scmp.eq.s32.totalorder %s35, 3
      %p274 = por %p272, %p273
      %p275 = scmp.ne.s32.totalorder %s264, %s265
      %p276 = scmp.eq.s32.totalorder %s35, 0
      %p277 = por %p275, %p276
      %p278 = scmp.ne.s32.totalorder %s264, %s265
      %p279 = scmp.eq.s32.totalorder %s36, 3
      %p280 = por %p278, %p279
      %p282 = scmp.ne.s32.totalorder %s265, %s281
      %p283 = scmp.eq.s32.totalorder %s36, 0
      %p284 = por %p282, %p283
      %s285 = smul.u32 %s38, 2
      %s286 = sadd.s32 %s285, %s39
      %s287 = smul.u32 %s52, 2
      %s288 = sadd.s32 %s287, %s48
      %s289 = ssub.s32 %s37, %s56
      %s290 = ssub.s32 %s286, %s288
      %s291 = sor.u32 %s289, %s290
      %p292 = scmp.eq.s32.totalorder %s291, 0
      %s294 = sadd.s32 %s293, 1
      %s295 = scalar_select %p292, %s293, %s294
      %p298 = pneg %p292
      %p299 = scmp.eq.s32.totalorder %s30, 3
      %p300 = por %p298, %p299
      %p301 = scmp.ne.s32.totalorder %s293, %s296
      %p302 = scmp.eq.s32.totalorder %s30, 0
      %p303 = por %p301, %p302
      %p304 = scmp.ne.s32.totalorder %s293, %s296
      %p305 = scmp.eq.s32.totalorder %s35, 3
      %p306 = por %p304, %p305
      %p307 = scmp.ne.s32.totalorder %s296, %s297
      %p308 = scmp.eq.s32.totalorder %s35, 0
      %p309 = por %p307, %p308
      %p310 = scmp.ne.s32.totalorder %s296, %s297
      %p311 = scmp.eq.s32.totalorder %s36, 3
      %p312 = por %p310, %p311
      %p314 = scmp.ne.s32.totalorder %s297, %s313
      %p315 = scmp.eq.s32.totalorder %s36, 0
      %p316 = por %p314, %p315
      %p317 = scmp.le.s32.totalorder 1, %s30
      %p318 = scmp.lt.s32.totalorder %s30, 5
      %p319 = pnand %p317, %p318
      %p320 = pneg %p319
      // Predicated region
      $region9: #{_lambda_.1} parent=5 // pred_check
        _
      $region10: #{_lambda_.1} parent=5 // pred_check_branch
        %322 = sbr.rel (%p319) target = $region12
      $region11: #{_lambda_.1} parent=5 // pred_region
        %s323 = ssub.s32 %s30, 1
        // Predicated region
        $region13: #{_lambda_.1} parent=11 // pred_check
          %p324 = pneg %p102
        $region14: #{_lambda_.1} parent=11 // pred_check_branch
          %326 = sbr.rel (%p324) target = $region16
        $region15: #{_lambda_.1} parent=11 // pred_region
          %s328 = ssub.s32 32, 32
          %329 = vsyncadd [#allocation6], %s328
          %s331 = sshll.u32 [#allocation5], 4
          %s332 = int_to_ptr.vmem [resolvable:$true] %s331
          %334 = dma.hbm_to_vmem [thread:$0]  %s1, 32, %s332, [#allocation6]
        $region16: #{_lambda_.1} parent=11 // pred_fallthru
          _
        // Predicated region
        $region17: #{_lambda_.1} parent=11 // pred_check
          %p335 = pneg %p123
        $region18: #{_lambda_.1} parent=11 // pred_check_branch
          %337 = sbr.rel (%p335) target = $region20
        $region19: #{_lambda_.1} parent=11 // pred_region
          %s339 = ssub.s32 16, 16
          %340 = vsyncadd [#allocation6], %s339
          %s342 = sshll.u32 [#allocation7], 4
          %s343 = int_to_ptr.vmem [resolvable:$true] %s342
          %345 = dma.hbm_to_vmem [thread:$0]  %s2, 16, %s343, [#allocation6]
        $region20: #{_lambda_.1} parent=11 // pred_fallthru
          _
        // Predicated region
        $region21: #{_lambda_.1} parent=11 // pred_check
          %p346 = pneg %p144
        $region22: #{_lambda_.1} parent=11 // pred_check_branch
          %348 = sbr.rel (%p346) target = $region24
        $region23: #{_lambda_.1} parent=11 // pred_region
          %s350 = ssub.s32 512, 512
          %351 = vsyncadd [#allocation9], %s350
          %s352 = sshll.u32 [#allocation8], 4
          %s353 = int_to_ptr.vmem [resolvable:$true] %s352
          %358 = dma.hbm_to_vmem [thread:$0]  %s3, 512, %s353, [#allocation9], 64, 64, 4
        $region24: #{_lambda_.1} parent=11 // pred_fallthru
          _
        // Predicated region
        $region25: #{_lambda_.1} parent=11 // pred_check
          %p359 = pneg %p165
        $region26: #{_lambda_.1} parent=11 // pred_check_branch
          %361 = sbr.rel (%p359) target = $region28
        $region27: #{_lambda_.1} parent=11 // pred_region
          %s363 = ssub.s32 16, 16
          %364 = vsyncadd [#allocation9], %s363
          %s366 = sshll.u32 [#allocation10], 4
          %s367 = int_to_ptr.vmem [resolvable:$true] %s366
          %369 = dma.hbm_to_vmem [thread:$0]  %s4, 16, %s367, [#allocation9]
        $region28: #{_lambda_.1} parent=11 // pred_fallthru
          _
        // Predicated region
        $region29: #{_lambda_.1} parent=11 // pred_check
          %p370 = pneg %p186
        $region30: #{_lambda_.1} parent=11 // pred_check_branch
          %372 = sbr.rel (%p370) target = $region32
        $region31: #{_lambda_.1} parent=11 // pred_region
          %s374 = ssub.s32 512, 512
          %375 = vsyncadd [#allocation12], %s374
          %s376 = sshll.u32 [#allocation11], 4
          %s377 = int_to_ptr.vmem [resolvable:$true] %s376
          %382 = dma.hbm_to_vmem [thread:$0]  %s5, 512, %s377, [#allocation12], 64, 64, 4
        $region32: #{_lambda_.1} parent=11 // pred_fallthru
          _
        // Predicated region
        $region33: #{_lambda_.1} parent=11 // pred_check
          %p383 = pneg %p207
        $region34: #{_lambda_.1} parent=11 // pred_check_branch
          %385 = sbr.rel (%p383) target = $region36
        $region35: #{_lambda_.1} parent=11 // pred_region
          %s387 = ssub.s32 16, 16
          %388 = vsyncadd [#allocation12], %s387
          %s390 = sshll.u32 [#allocation13], 4
          %s391 = int_to_ptr.vmem [resolvable:$true] %s390
          %393 = dma.hbm_to_vmem [thread:$0]  %s6, 16, %s391, [#allocation12]
        $region36: #{_lambda_.1} parent=11 // pred_fallthru
          _
        // Predicated region
        $region37: #{_lambda_.1} parent=11 // pred_check
          %p394 = pneg %p228
        $region38: #{_lambda_.1} parent=11 // pred_check_branch
          %396 = sbr.rel (%p394) target = $region40
        $region39: #{_lambda_.1} parent=11 // pred_region
          %s398 = ssub.s32 8192, 8192
          %399 = vsyncadd [#allocation15], %s398
          %s400 = sshll.u32 [#allocation14], 4
          %s401 = int_to_ptr.vmem [resolvable:$true] %s400
          %406 = dma.hbm_to_vmem [thread:$0]  %s7, 8192, %s401, [#allocation15], 512, 512, 32
        $region40: #{_lambda_.1} parent=11 // pred_fallthru
          _
        // Predicated region
        $region41: #{_lambda_.1} parent=11 // pred_check
          %p407 = pneg %p249
        $region42: #{_lambda_.1} parent=11 // pred_check_branch
          %409 = sbr.rel (%p407) target = $region44
        $region43: #{_lambda_.1} parent=11 // pred_region
          %s411 = ssub.s32 128, 128
          %412 = vsyncadd [#allocation15], %s411
          %s414 = sshll.u32 [#allocation16], 4
          %s415 = int_to_ptr.vmem [resolvable:$true] %s414
          %417 = dma.hbm_to_vmem [thread:$0]  %s8, 128, %s415, [#allocation15]
        $region44: #{_lambda_.1} parent=11 // pred_fallthru
          _
      $region12: #{_lambda_.1} parent=5 // pred_fallthru
        _
      %p418 = scmp.lt.s32.totalorder %s30, 4
      // Predicated region
      $region45: #{_lambda_.1} parent=5 // pred_check
        %p419 = pneg %p418
      $region46: #{_lambda_.1} parent=5 // pred_check_branch
        %421 = sbr.rel (%p419) target = $region48
      $region47: #{_lambda_.1} parent=5 // pred_region
        // Predicated region
        $region49: #{_lambda_.1} parent=47 // pred_check
          %p422 = pneg %p75
        $region50: #{_lambda_.1} parent=47 // pred_check_branch
          %424 = sbr.rel (%p422) target = $region52
        $region51: #{_lambda_.1} parent=47 // pred_region
          %s425 = sand.u32 %s65, 1
          %s426 = scalar_lea.sflag [#allocation3], %s425
          %s427 = sand.u32 %s65, 1
          %s428 = smul.addr %s427, 128
          %s429 = scalar_lea.vmem [#allocation2], %s428
          %s430 = smul.u32 %s38, 2
          %s431 = sadd.s32 %s430, %s39
          %s432 = smul.u32 16, %s431
          %s434 = ssub.s32 2048, 2048
          %435 = vsyncadd %s426, %s434
          %s436 = smul.addr %s37, 32
          %s437 = sadd.s32 %s432, %s436
          %s438 = smul.addr %s437, 128
          %s439 = scalar_lea.hbm %s0, %s438
          %s440 = sshll.u32 %s429, 4
          %s441 = int_to_ptr.vmem [resolvable:$true] %s440
          %446 = dma.hbm_to_vmem [thread:$0]  %s439, 2048, %s441, %s426, 128, 128, 8
        $region52: #{_lambda_.1} parent=47 // pred_fallthru
          _
      $region48: #{_lambda_.1} parent=5 // pred_fallthru
        _
      %p447 = scmp.le.s32.totalorder 1, %s30
      %p448 = scmp.lt.s32.totalorder %s30, 5
      %p449 = pnand %p447, %p448
      %p450 = pneg %p449
      // Predicated region
      $region53: #{_lambda_.1} parent=5 // pred_check
        _
      $region54: #{_lambda_.1} parent=5 // pred_check_branch
        %452 = sbr.rel (%p449) target = $region56
      $region55: #{_lambda_.1} parent=5 // pred_region
        %s453 = ssub.s32 %s30, 1
        %s454 = sand.u32 %s68, 1
        %s455 = scalar_lea.sflag [#allocation3], %s454
        %s456 = sand.u32 %s68, 1
        %s457 = smul.addr %s456, 128
        %s458 = scalar_lea.vmem [#allocation2], %s457
        // Predicated region
        $region57: #{_lambda_.1} parent=55 // pred_check
          %p459 = pneg %p81
        $region58: #{_lambda_.1} parent=55 // pred_check_branch
          %461 = sbr.rel (%p459) target = $region60
        $region59: #{_lambda_.1} parent=55 // pred_region
          %462 = dma.done %s455, 2048
        $region60: #{_lambda_.1} parent=55 // pred_fallthru
          _
        // Predicated region
        $region61: #{_lambda_.1} parent=55 // pred_check
          %p463 = pneg %p102
        $region62: #{_lambda_.1} parent=55 // pred_check_branch
          %465 = sbr.rel (%p463) target = $region64
        $region63: #{_lambda_.1} parent=55 // pred_region
          %466 = dma.done [#allocation6], 32
        $region64: #{_lambda_.1} parent=55 // pred_fallthru
          _
        // Predicated region
        $region65: #{_lambda_.1} parent=55 // pred_check
          %p467 = pneg %p123
        $region66: #{_lambda_.1} parent=55 // pred_check_branch
          %469 = sbr.rel (%p467) target = $region68
        $region67: #{_lambda_.1} parent=55 // pred_region
          %470 = dma.done [#allocation6], 16
        $region68: #{_lambda_.1} parent=55 // pred_fallthru
          _
        // Predicated region
        $region69: #{_lambda_.1} parent=55 // pred_check
          %p471 = pneg %p144
        $region70: #{_lambda_.1} parent=55 // pred_check_branch
          %473 = sbr.rel (%p471) target = $region72
        $region71: #{_lambda_.1} parent=55 // pred_region
          %474 = dma.done [#allocation9], 512
        $region72: #{_lambda_.1} parent=55 // pred_fallthru
          _
        // Predicated region
        $region73: #{_lambda_.1} parent=55 // pred_check
          %p475 = pneg %p165
        $region74: #{_lambda_.1} parent=55 // pred_check_branch
          %477 = sbr.rel (%p475) target = $region76
        $region75: #{_lambda_.1} parent=55 // pred_region
          %478 = dma.done [#allocation9], 16
        $region76: #{_lambda_.1} parent=55 // pred_fallthru
          _
        // Predicated region
        $region77: #{_lambda_.1} parent=55 // pred_check
          %p479 = pneg %p186
        $region78: #{_lambda_.1} parent=55 // pred_check_branch
          %481 = sbr.rel (%p479) target = $region80
        $region79: #{_lambda_.1} parent=55 // pred_region
          %482 = dma.done [#allocation12], 512
        $region80: #{_lambda_.1} parent=55 // pred_fallthru
          _
        // Predicated region
        $region81: #{_lambda_.1} parent=55 // pred_check
          %p483 = pneg %p207
        $region82: #{_lambda_.1} parent=55 // pred_check_branch
          %485 = sbr.rel (%p483) target = $region84
        $region83: #{_lambda_.1} parent=55 // pred_region
          %486 = dma.done [#allocation12], 16
        $region84: #{_lambda_.1} parent=55 // pred_fallthru
          _
        // Predicated region
        $region85: #{_lambda_.1} parent=55 // pred_check
          %p487 = pneg %p228
        $region86: #{_lambda_.1} parent=55 // pred_check_branch
          %489 = sbr.rel (%p487) target = $region88
        $region87: #{_lambda_.1} parent=55 // pred_region
          %490 = dma.done [#allocation15], 8192
        $region88: #{_lambda_.1} parent=55 // pred_fallthru
          _
        // Predicated region
        $region89: #{_lambda_.1} parent=55 // pred_check
          %p491 = pneg %p249
        $region90: #{_lambda_.1} parent=55 // pred_check_branch
          %493 = sbr.rel (%p491) target = $region92
        $region91: #{_lambda_.1} parent=55 // pred_region
          %494 = dma.done [#allocation15], 128
        $region92: #{_lambda_.1} parent=55 // pred_fallthru
          _
        %s495 = sand.u32 %s68, 1
        %s496 = scalar_lea.sflag [#allocation3], %s495
        %s497 = sand.u32 %s68, 1
        %s498 = smul.addr %s497, 128
        %s499 = scalar_lea.vmem [#allocation2], %s498
        %p500 = pneg %p81
        %p501 = pneg %p78
        %p502 = pneg %p102
        %p503 = pneg %p99
        %p504 = pneg %p123
        %p505 = pneg %p120
        %p506 = pneg %p144
        %p507 = pneg %p141
        %p508 = pneg %p165
        %p509 = pneg %p162
        %p510 = pneg %p186
        %p511 = pneg %p183
        %p512 = pneg %p207
        %p513 = pneg %p204
        %p514 = pneg %p228
        %p515 = pneg %p225
        %p516 = pneg %p249
        %p517 = pneg %p246
        %p518 = pneg %p277
        %p519 = pneg %p274
        %s520 = sand.u32 %s264, 1
        %s521 = scalar_lea.sflag [#allocation4], %s520
        %s522 = sand.u32 %s264, 1
        %s523 = smul.addr %s522, 8
        %s524 = scalar_lea.vmem [#allocation17], %s523
        %p525 = pneg %p309
        %p526 = pneg %p306
        %s527 = sand.u32 %s296, 1
        %s528 = scalar_lea.sflag [#allocation19], %s527
        %s529 = sand.u32 %s296, 1
        %s530 = smul.addr %s529, 64
        %s531 = scalar_lea.vmem [#allocation18], %s530
        %s532 = smul.u32 %s41, 2
        %s533 = sadd.s32 %s532, %s42
        %s534 = smul.u32 16, %s533
        %s535 = sadd.s32 %s40, %s41
        %s536 = smul.u32 %s41, 2
        %s537 = sadd.s32 %s536, %s42
        %s538 = smul.u32 16, %s537
        %p540 = scmp.eq.s32.totalorder %s42, 0
        // Predicated region
        $region93: #{_lambda_.1} parent=55 // pred_check
          %p541 = pneg %p540
        $region94: #{_lambda_.1} parent=55 // pred_check_branch
          %543 = sbr.rel (%p541) target = $region96
        $region95: #{_lambda_.1} parent=55 // pred_region
          %544 = vst [vmem:[%s524] sm:$0xff] -inf
        $region96: #{_lambda_.1} parent=55 // pred_fallthru
          _
        %v545 = vld [vmem:[%s458] sm:$0xff]
        %v546 = vld [vmem:[%s458 + $0x8] sm:$0xff]
        %v547 = vld [vmem:[%s458 + $0x10] sm:$0xff]
        %v548 = vld [vmem:[%s458 + $0x18] sm:$0xff]
        %v549 = vld [vmem:[%s458 + $0x20] sm:$0xff]
        %v550 = vld [vmem:[%s458 + $0x28] sm:$0xff]
        %v551 = vld [vmem:[%s458 + $0x30] sm:$0xff]
        %v552 = vld [vmem:[%s458 + $0x38] sm:$0xff]
        %v553 = vld [vmem:[%s458 + $0x40] sm:$0xff]
        %v554 = vld [vmem:[%s458 + $0x48] sm:$0xff]
        %v555 = vld [vmem:[%s458 + $0x50] sm:$0xff]
        %v556 = vld [vmem:[%s458 + $0x58] sm:$0xff]
        %v557 = vld [vmem:[%s458 + $0x60] sm:$0xff]
        %v558 = vld [vmem:[%s458 + $0x68] sm:$0xff]
        %v559 = vld [vmem:[%s458 + $0x70] sm:$0xff]
        %v560 = vld [vmem:[%s458 + $0x78] sm:$0xff]
        %v561 = vld [vmem:[#allocation5] sm:$0x3]
        %563 = vset.pattern.permute.xlu0 0
        %564 = vperm.xlu0 %563, %v545
        %v565 = vpop.permute.xlu0 %564
        %568 = vset.pattern.permute.xlu0 0
        %569 = vperm.xlu0 %568, %v546
        %v570 = vpop.permute.xlu0 %569
        %573 = vset.pattern.permute.xlu0 0
        %574 = vperm.xlu0 %573, %v547
        %v575 = vpop.permute.xlu0 %574
        %578 = vset.pattern.permute.xlu0 0
        %579 = vperm.xlu0 %578, %v548
        %v580 = vpop.permute.xlu0 %579
        %583 = vset.pattern.permute.xlu0 0
        %584 = vperm.xlu0 %583, %v549
        %v585 = vpop.permute.xlu0 %584
        %588 = vset.pattern.permute.xlu0 0
        %589 = vperm.xlu0 %588, %v550
        %v590 = vpop.permute.xlu0 %589
        %593 = vset.pattern.permute.xlu0 0
        %594 = vperm.xlu0 %593, %v551
        %v595 = vpop.permute.xlu0 %594
        %598 = vset.pattern.permute.xlu0 0
        %599 = vperm.xlu0 %598, %v552
        %v600 = vpop.permute.xlu0 %599
        %603 = vset.pattern.permute.xlu0 0
        %604 = vperm.xlu0 %603, %v553
        %v605 = vpop.permute.xlu0 %604
        %608 = vset.pattern.permute.xlu0 0
        %609 = vperm.xlu0 %608, %v554
        %v610 = vpop.permute.xlu0 %609
        %613 = vset.pattern.permute.xlu0 0
        %614 = vperm.xlu0 %613, %v555
        %v615 = vpop.permute.xlu0 %614
        %618 = vset.pattern.permute.xlu0 0
        %619 = vperm.xlu0 %618, %v556
        %v620 = vpop.permute.xlu0 %619
        %623 = vset.pattern.permute.xlu0 0
        %624 = vperm.xlu0 %623, %v557
        %v625 = vpop.permute.xlu0 %624
        %628 = vset.pattern.permute.xlu0 0
        %629 = vperm.xlu0 %628, %v558
        %v630 = vpop.permute.xlu0 %629
        %633 = vset.pattern.permute.xlu0 0
        %634 = vperm.xlu0 %633, %v559
        %v635 = vpop.permute.xlu0 %634
        %638 = vset.pattern.permute.xlu0 0
        %639 = vperm.xlu0 %638, %v560
        %v640 = vpop.permute.xlu0 %639
        %v642 = vlaneseq
        %v643 = vshrl.u32 %v642, 7
        %v644 = vsub.s32 0, %v643
        %v645 = vrot.slane %v561, %v644
        %v646 = vmul.f32 %v565, %v645
        %v647 = vmul.f32 %v570, %v645
        %v648 = vmul.f32 %v575, %v645
        %v649 = vmul.f32 %v580, %v645
        %v650 = vmul.f32 %v585, %v645
        %v651 = vmul.f32 %v590, %v645
        %v652 = vmul.f32 %v595, %v645
        %v653 = vmul.f32 %v600, %v645
        %v654 = vmul.f32 %v605, %v645
        %v655 = vmul.f32 %v610, %v645
        %v656 = vmul.f32 %v615, %v645
        %v657 = vmul.f32 %v620, %v645
        %v658 = vmul.f32 %v625, %v645
        %v659 = vmul.f32 %v630, %v645
        %v660 = vmul.f32 %v635, %v645
        %v661 = vmul.f32 %v640, %v645
        %662 = vset.pattern.permute.xlu0 1
        %663 = vperm.xlu0 %662, %v545
        %v664 = vpop.permute.xlu0 %663
        %666 = vset.pattern.permute.xlu0 1
        %667 = vperm.xlu0 %666, %v546
        %v668 = vpop.permute.xlu0 %667
        %670 = vset.pattern.permute.xlu0 1
        %671 = vperm.xlu0 %670, %v547
        %v672 = vpop.permute.xlu0 %671
        %674 = vset.pattern.permute.xlu0 1
        %675 = vperm.xlu0 %674, %v548
        %v676 = vpop.permute.xlu0 %675
        %678 = vset.pattern.permute.xlu0 1
        %679 = vperm.xlu0 %678, %v549
        %v680 = vpop.permute.xlu0 %679
        %682 = vset.pattern.permute.xlu0 1
        %683 = vperm.xlu0 %682, %v550
        %v684 = vpop.permute.xlu0 %683
        %686 = vset.pattern.permute.xlu0 1
        %687 = vperm.xlu0 %686, %v551
        %v688 = vpop.permute.xlu0 %687
        %690 = vset.pattern.permute.xlu0 1
        %691 = vperm.xlu0 %690, %v552
        %v692 = vpop.permute.xlu0 %691
        %694 = vset.pattern.permute.xlu0 1
        %695 = vperm.xlu0 %694, %v553
        %v696 = vpop.permute.xlu0 %695
        %698 = vset.pattern.permute.xlu0 1
        %699 = vperm.xlu0 %698, %v554
        %v700 = vpop.permute.xlu0 %699
        %702 = vset.pattern.permute.xlu0 1
        %703 = vperm.xlu0 %702, %v555
        %v704 = vpop.permute.xlu0 %703
        %706 = vset.pattern.permute.xlu0 1
        %707 = vperm.xlu0 %706, %v556
        %v708 = vpop.permute.xlu0 %707
        %710 = vset.pattern.permute.xlu0 1
        %711 = vperm.xlu0 %710, %v557
        %v712 = vpop.permute.xlu0 %711
        %714 = vset.pattern.permute.xlu0 1
        %715 = vperm.xlu0 %714, %v558
        %v716 = vpop.permute.xlu0 %715
        %718 = vset.pattern.permute.xlu0 1
        %719 = vperm.xlu0 %718, %v559
        %v720 = vpop.permute.xlu0 %719
        %722 = vset.pattern.permute.xlu0 1
        %723 = vperm.xlu0 %722, %v560
        %v724 = vpop.permute.xlu0 %723
        %v726 = vlaneseq
        %v727 = vshrl.u32 %v726, 7
        %v728 = vsub.s32 1, %v727
        %v729 = vrot.slane %v561, %v728
        %v730 = vmul.f32 %v664, %v729
        %v731 = vmul.f32 %v668, %v729
        %v732 = vmul.f32 %v672, %v729
        %v733 = vmul.f32 %v676, %v729
        %v734 = vmul.f32 %v680, %v729
        %v735 = vmul.f32 %v684, %v729
        %v736 = vmul.f32 %v688, %v729
        %v737 = vmul.f32 %v692, %v729
        %v738 = vmul.f32 %v696, %v729
        %v739 = vmul.f32 %v700, %v729
        %v740 = vmul.f32 %v704, %v729
        %v741 = vmul.f32 %v708, %v729
        %v742 = vmul.f32 %v712, %v729
        %v743 = vmul.f32 %v716, %v729
        %v744 = vmul.f32 %v720, %v729
        %v745 = vmul.f32 %v724, %v729
        %v746 = vadd.f32 %v646, %v730
        %v747 = vadd.f32 %v647, %v731
        %v748 = vadd.f32 %v648, %v732
        %v749 = vadd.f32 %v649, %v733
        %v750 = vadd.f32 %v650, %v734
        %v751 = vadd.f32 %v651, %v735
        %v752 = vadd.f32 %v652, %v736
        %v753 = vadd.f32 %v653, %v737
        %v754 = vadd.f32 %v654, %v738
        %v755 = vadd.f32 %v655, %v739
        %v756 = vadd.f32 %v656, %v740
        %v757 = vadd.f32 %v657, %v741
        %v758 = vadd.f32 %v658, %v742
        %v759 = vadd.f32 %v659, %v743
        %v760 = vadd.f32 %v660, %v744
        %v761 = vadd.f32 %v661, %v745
        %v762 = vld [vmem:[#allocation7] sm:$0x1]
        %v764 = vlaneseq
        %v765 = vshrl.u32 %v764, 7
        %v766 = vsub.s32 0, %v765
        %v767 = vrot.slane %v762, %v766
        %v769 = vadd.f32 %v746, %v767
        %v770 = vadd.f32 %v747, %v767
        %v771 = vadd.f32 %v748, %v767
        %v772 = vadd.f32 %v749, %v767
        %v773 = vadd.f32 %v750, %v767
        %v774 = vadd.f32 %v751, %v767
        %v775 = vadd.f32 %v752, %v767
        %v776 = vadd.f32 %v753, %v767
        %v777 = vadd.f32 %v754, %v767
        %v778 = vadd.f32 %v755, %v767
        %v779 = vadd.f32 %v756, %v767
        %v780 = vadd.f32 %v757, %v767
        %v781 = vadd.f32 %v758, %v767
        %v782 = vadd.f32 %v759, %v767
        %v783 = vadd.f32 %v760, %v767
        %v784 = vadd.f32 %v761, %v767
        %v785 = vpack.c.bf16 %v770, %v769
        %v786 = vpack.c.bf16 %v772, %v771
        %v787 = vpack.c.bf16 %v774, %v773
        %v788 = vpack.c.bf16 %v776, %v775
        %v789 = vpack.c.bf16 %v778, %v777
        %v790 = vpack.c.bf16 %v780, %v779
        %v791 = vpack.c.bf16 %v782, %v781
        %v792 = vpack.c.bf16 %v784, %v783
        %v793 = vtanh.bf16.pop %v785
        %v794 = vtanh.bf16.pop %v786
        %v795 = vtanh.bf16.pop %v787
        %v796 = vtanh.bf16.pop %v788
        %v797 = vtanh.bf16.pop %v789
        %v798 = vtanh.bf16.pop %v790
        %v799 = vtanh.bf16.pop %v791
        %v800 = vtanh.bf16.pop %v792
        %v801 = vld [vmem:[#allocation8] sm:$0xf]
        %v802 = vld [vmem:[#allocation8 + $0x4] sm:$0xf]
        %v803 = vld [vmem:[#allocation8 + $0x8] sm:$0xf]
        %v804 = vld [vmem:[#allocation8 + $0xc] sm:$0xf]
        %v805 = vld [vmem:[#allocation8 + $0x10] sm:$0xf]
        %v806 = vld [vmem:[#allocation8 + $0x14] sm:$0xf]
        %v807 = vld [vmem:[#allocation8 + $0x18] sm:$0xf]
        %v808 = vld [vmem:[#allocation8 + $0x1c] sm:$0xf]
        %v809 = vld [vmem:[#allocation10] sm:$0x1]
        %v811 = vlaneseq
        %v812 = vshrl.u32 %v811, 7
        %v813 = vsub.s32 0, %v812
        %v814 = vrot.slane %v809, %v813
        %v824 = vunpack.c.l.b16 %v801
        %v825 = vunpack.c.l.b16 %v802
        %v826 = vunpack.c.l.b16 %v803
        %v827 = vunpack.c.l.b16 %v804
        %v828 = vunpack.c.l.b16 %v805
        %v829 = vunpack.c.l.b16 %v806
        %v830 = vunpack.c.l.b16 %v807
        %v831 = vunpack.c.l.b16 %v808
        %v832 = vpack.c.b16 %v825, %v824
        %v833 = vpack.c.b16 %v827, %v826
        %v834 = vpack.c.b16 %v829, %v828
        %v835 = vpack.c.b16 %v831, %v830
        %vm840 = vcmask 523264
        %v842 = vsel %vm840, %v793, 0
        %v845 = vsel %vm840, %v794, 0
        %v848 = vsel %vm840, %v795, 0
        %v851 = vsel %vm840, %v796, 0
        %v854 = vsel %vm840, %v797, 0
        %v857 = vsel %vm840, %v798, 0
        %v860 = vsel %vm840, %v799, 0
        %v863 = vsel %vm840, %v800, 0
        %865 = vmatprep.subr.bf16.mxu0 0
        %866 = vmatpush1.bf16.msra.mxu0 %v832
        %867 = vmatprep.subr.bf16.mxu0 0
        %868 = vmatpush1.bf16.msra.mxu0 %v833
        %869 = vmatprep.subr.bf16.mxu0 0
        %870 = vmatpush1.bf16.msra.mxu0 %v834
        %871 = vmatprep.subr.bf16.mxu0 0
        %872 = vmatpush1.bf16.msra.mxu0 %v835
        %873 = vmatprep.subr.bf16.mxu0 0
        %874 = vmatpush1.bf16.msra.mxu0 0
        %875 = vmatprep.subr.bf16.mxu0 0
        %876 = vmatpush1.bf16.msra.mxu0 0
        %877 = vmatprep.subr.bf16.mxu0 0
        %878 = vmatpush1.bf16.msra.mxu0 0
        %879 = vmatprep.subr.bf16.mxu0 0
        %880 = vmatpush1.bf16.msra.mxu0 0
        %881 = vmatprep.subr.bf16.mxu0 0
        %882 = vmatpush1.bf16.msra.mxu0 0
        %883 = vmatprep.subr.bf16.mxu0 0
        %884 = vmatpush1.bf16.msra.mxu0 0
        %885 = vmatprep.subr.bf16.mxu0 0
        %886 = vmatpush1.bf16.msra.mxu0 0
        %887 = vmatprep.subr.bf16.mxu0 0
        %888 = vmatpush1.bf16.msra.mxu0 0
        %889 = vmatprep.subr.bf16.mxu0 0
        %890 = vmatpush1.bf16.msra.mxu0 0
        %891 = vmatprep.subr.bf16.mxu0 0
        %892 = vmatpush1.bf16.msra.mxu0 0
        %893 = vmatprep.subr.bf16.mxu0 0
        %894 = vmatpush1.bf16.msra.mxu0 0
        %895 = vmatprep.subr.bf16.mxu0 0
        %896 = vmatpush1.bf16.msra.mxu0 0
        %897 = vmatprep.mubr.bf16.mxu0 0
        %898 = vmatmul.mubr.bf16.gmra.mrb[0].mxu0 %v842
        %v899 = vpop.f32.mrb[0].mxu0
        %v900 = vadd.f32 %v814, %v899
        %v901 = vpop.f32.mrb[0].mxu0
        %v902 = vpop.f32.mrb[0].mxu0
        %v903 = vadd.f32 %v814, %v902
        %v904 = vpop.f32.mrb[0].mxu0
        %905 = vmatprep.mubr.bf16.mxu0 0
        %906 = vmatmul.mubr.bf16.gmra.mrb[0].mxu0 %v845
        %v907 = vpop.f32.mrb[0].mxu0
        %v908 = vadd.f32 %v814, %v907
        %v909 = vpop.f32.mrb[0].mxu0
        %v910 = vpop.f32.mrb[0].mxu0
        %v911 = vadd.f32 %v814, %v910
        %v912 = vpop.f32.mrb[0].mxu0
        %913 = vmatprep.mubr.bf16.mxu0 0
        %914 = vmatmul.mubr.bf16.gmra.mrb[0].mxu0 %v848
        %v915 = vpop.f32.mrb[0].mxu0
        %v916 = vadd.f32 %v814, %v915
        %v917 = vpop.f32.mrb[0].mxu0
        %v918 = vpop.f32.mrb[0].mxu0
        %v919 = vadd.f32 %v814, %v918
        %v920 = vpop.f32.mrb[0].mxu0
        %921 = vmatprep.mubr.bf16.mxu0 0
        %922 = vmatmul.mubr.bf16.gmra.mrb[0].mxu0 %v851
        %v923 = vpop.f32.mrb[0].mxu0
        %v924 = vadd.f32 %v814, %v923
        %v925 = vpop.f32.mrb[0].mxu0
        %v926 = vpop.f32.mrb[0].mxu0
        %v927 = vadd.f32 %v814, %v926
        %v928 = vpop.f32.mrb[0].mxu0
        %929 = vmatprep.mubr.bf16.mxu0 0
        %930 = vmatmul.mubr.bf16.gmra.mrb[0].mxu0 %v854
        %v931 = vpop.f32.mrb[0].mxu0
        %v932 = vadd.f32 %v814, %v931
        %v933 = vpop.f32.mrb[0].mxu0
        %v934 = vpop.f32.mrb[0].mxu0
        %v935 = vadd.f32 %v814, %v934
        %v936 = vpop.f32.mrb[0].mxu0
        %937 = vmatprep.mubr.bf16.mxu0 0
        %938 = vmatmul.mubr.bf16.gmra.mrb[0].mxu0 %v857
        %v939 = vpop.f32.mrb[0].mxu0
        %v940 = vadd.f32 %v814, %v939
        %v941 = vpop.f32.mrb[0].mxu0
        %v942 = vpop.f32.mrb[0].mxu0
        %v943 = vadd.f32 %v814, %v942
        %v944 = vpop.f32.mrb[0].mxu0
        %945 = vmatprep.mubr.bf16.mxu0 0
        %946 = vmatmul.mubr.bf16.gmra.mrb[0].mxu0 %v860
        %v947 = vpop.f32.mrb[0].mxu0
        %v948 = vadd.f32 %v814, %v947
        %v949 = vpop.f32.mrb[0].mxu0
        %v950 = vpop.f32.mrb[0].mxu0
        %v951 = vadd.f32 %v814, %v950
        %v952 = vpop.f32.mrb[0].mxu0
        %953 = vmatprep.mubr.bf16.mxu0 0
        %954 = vmatmul.mubr.bf16.gmra.mrb[0].mxu0 %v863
        %v955 = vpop.f32.mrb[0].mxu0
        %v956 = vadd.f32 %v814, %v955
        %v957 = vpop.f32.mrb[0].mxu0
        %v958 = vpop.f32.mrb[0].mxu0
        %v959 = vadd.f32 %v814, %v958
        %v960 = vpop.f32.mrb[0].mxu0
        %961 = vdwg.mxu0
        %v962 = vpack.c.bf16 %v903, %v900
        %v963 = vpack.c.bf16 %v911, %v908
        %v964 = vpack.c.bf16 %v919, %v916
        %v965 = vpack.c.bf16 %v927, %v924
        %v966 = vpack.c.bf16 %v935, %v932
        %v967 = vpack.c.bf16 %v943, %v940
        %v968 = vpack.c.bf16 %v951, %v948
        %v969 = vpack.c.bf16 %v959, %v956
        %v970 = vtanh.bf16.pop %v962
        %v971 = vtanh.bf16.pop %v963
        %v972 = vtanh.bf16.pop %v964
        %v973 = vtanh.bf16.pop %v965
        %v974 = vtanh.bf16.pop %v966
        %v975 = vtanh.bf16.pop %v967
        %v976 = vtanh.bf16.pop %v968
        %v977 = vtanh.bf16.pop %v969
        %v978 = vld [vmem:[#allocation11] sm:$0xf]
        %v979 = vld [vmem:[#allocation11 + $0x4] sm:$0xf]
        %v980 = vld [vmem:[#allocation11 + $0x8] sm:$0xf]
        %v981 = vld [vmem:[#allocation11 + $0xc] sm:$0xf]
        %v982 = vld [vmem:[#allocation11 + $0x10] sm:$0xf]
        %v983 = vld [vmem:[#allocation11 + $0x14] sm:$0xf]
        %v984 = vld [vmem:[#allocation11 + $0x18] sm:$0xf]
        %v985 = vld [vmem:[#allocation11 + $0x1c] sm:$0xf]
        %v986 = vld [vmem:[#allocation13] sm:$0x1]
        %v988 = vlaneseq
        %v989 = vshrl.u32 %v988, 7
        %v990 = vsub.s32 0, %v989
        %v991 = vrot.slane %v986, %v990
        %v1001 = vunpack.c.l.b16 %v978
        %v1002 = vunpack.c.l.b16 %v979
        %v1003 = vunpack.c.l.b16 %v980
        %v1004 = vunpack.c.l.b16 %v981
        %v1005 = vunpack.c.l.b16 %v982
        %v1006 = vunpack.c.l.b16 %v983
        %v1007 = vunpack.c.l.b16 %v984
        %v1008 = vunpack.c.l.b16 %v985
        %v1009 = vpack.c.b16 %v1002, %v1001
        %v1010 = vpack.c.b16 %v1004, %v1003
        %v1011 = vpack.c.b16 %v1006, %v1005
        %v1012 = vpack.c.b16 %v1008, %v1007
        %v1018 = vsel %vm840, %v970, 0
        %v1021 = vsel %vm840, %v971, 0
        %v1024 = vsel %vm840, %v972, 0
        %v1027 = vsel %vm840, %v973, 0
        %v1030 = vsel %vm840, %v974, 0
        %v1033 = vsel %vm840, %v975, 0
        %v1036 = vsel %vm840, %v976, 0
        %v1039 = vsel %vm840, %v977, 0
        %1041 = vmatprep.subr.bf16.mxu0 0
        %1042 = vmatpush1.bf16.msra.mxu0 %v1009
        %1043 = vmatprep.subr.bf16.mxu0 0
        %1044 = vmatpush1.bf16.msra.mxu0 %v1010
        %1045 = vmatprep.subr.bf16.mxu0 0
        %1046 = vmatpush1.bf16.msra.mxu0 %v1011
        %1047 = vmatprep.subr.bf16.mxu0 0
        %1048 = vmatpush1.bf16.msra.mxu0 %v1012
        %1049 = vmatprep.subr.bf16.mxu0 0
        %1050 = vmatpush1.bf16.msra.mxu0 0
        %1051 = vmatprep.subr.bf16.mxu0 0
        %1052 = vmatpush1.bf16.msra.mxu0 0
        %1053 = vmatprep.subr.bf16.mxu0 0
        %1054 = vmatpush1.bf16.msra.mxu0 0
        %1055 = vmatprep.subr.bf16.mxu0 0
        %1056 = vmatpush1.bf16.msra.mxu0 0
        %1057 = vmatprep.subr.bf16.mxu0 0
        %1058 = vmatpush1.bf16.msra.mxu0 0
        %1059 = vmatprep.subr.bf16.mxu0 0
        %1060 = vmatpush1.bf16.msra.mxu0 0
        %1061 = vmatprep.subr.bf16.mxu0 0
        %1062 = vmatpush1.bf16.msra.mxu0 0
        %1063 = vmatprep.subr.bf16.mxu0 0
        %1064 = vmatpush1.bf16.msra.mxu0 0
        %1065 = vmatprep.subr.bf16.mxu0 0
        %1066 = vmatpush1.bf16.msra.mxu0 0
        %1067 = vmatprep.subr.bf16.mxu0 0
        %1068 = vmatpush1.bf16.msra.mxu0 0
        %1069 = vmatprep.subr.bf16.mxu0 0
        %1070 = vmatpush1.bf16.msra.mxu0 0
        %1071 = vmatprep.subr.bf16.mxu0 0
        %1072 = vmatpush1.bf16.msra.mxu0 0
        %1073 = vmatprep.mubr.bf16.mxu0 0
        %1074 = vmatmul.mubr.bf16.gmra.mrb[0].mxu0 %v1018
        %v1075 = vpop.f32.mrb[0].mxu0
        %v1076 = vadd.f32 %v991, %v1075
        %v1077 = vpop.f32.mrb[0].mxu0
        %v1078 = vpop.f32.mrb[0].mxu0
        %v1079 = vadd.f32 %v991, %v1078
        %v1080 = vpop.f32.mrb[0].mxu0
        %1081 = vmatprep.mubr.bf16.mxu0 0
        %1082 = vmatmul.mubr.bf16.gmra.mrb[0].mxu0 %v1021
        %v1083 = vpop.f32.mrb[0].mxu0
        %v1084 = vadd.f32 %v991, %v1083
        %v1085 = vpop.f32.mrb[0].mxu0
        %v1086 = vpop.f32.mrb[0].mxu0
        %v1087 = vadd.f32 %v991, %v1086
        %v1088 = vpop.f32.mrb[0].mxu0
        %1089 = vmatprep.mubr.bf16.mxu0 0
        %1090 = vmatmul.mubr.bf16.gmra.mrb[0].mxu0 %v1024
        %v1091 = vpop.f32.mrb[0].mxu0
        %v1092 = vadd.f32 %v991, %v1091
        %v1093 = vpop.f32.mrb[0].mxu0
        %v1094 = vpop.f32.mrb[0].mxu0
        %v1095 = vadd.f32 %v991, %v1094
        %v1096 = vpop.f32.mrb[0].mxu0
        %1097 = vmatprep.mubr.bf16.mxu0 0
        %1098 = vmatmul.mubr.bf16.gmra.mrb[0].mxu0 %v1027
        %v1099 = vpop.f32.mrb[0].mxu0
        %v1100 = vadd.f32 %v991, %v1099
        %v1101 = vpop.f32.mrb[0].mxu0
        %v1102 = vpop.f32.mrb[0].mxu0
        %v1103 = vadd.f32 %v991, %v1102
        %v1104 = vpop.f32.mrb[0].mxu0
        %1105 = vmatprep.mubr.bf16.mxu0 0
        %1106 = vmatmul.mubr.bf16.gmra.mrb[0].mxu0 %v1030
        %v1107 = vpop.f32.mrb[0].mxu0
        %v1108 = vadd.f32 %v991, %v1107
        %v1109 = vpop.f32.mrb[0].mxu0
        %v1110 = vpop.f32.mrb[0].mxu0
        %v1111 = vadd.f32 %v991, %v1110
        %v1112 = vpop.f32.mrb[0].mxu0
        %1113 = vmatprep.mubr.bf16.mxu0 0
        %1114 = vmatmul.mubr.bf16.gmra.mrb[0].mxu0 %v1033
        %v1115 = vpop.f32.mrb[0].mxu0
        %v1116 = vadd.f32 %v991, %v1115
        %v1117 = vpop.f32.mrb[0].mxu0
        %v1118 = vpop.f32.mrb[0].mxu0
        %v1119 = vadd.f32 %v991, %v1118
        %v1120 = vpop.f32.mrb[0].mxu0
        %1121 = vmatprep.mubr.bf16.mxu0 0
        %1122 = vmatmul.mubr.bf16.gmra.mrb[0].mxu0 %v1036
        %v1123 = vpop.f32.mrb[0].mxu0
        %v1124 = vadd.f32 %v991, %v1123
        %v1125 = vpop.f32.mrb[0].mxu0
        %v1126 = vpop.f32.mrb[0].mxu0
        %v1127 = vadd.f32 %v991, %v1126
        %v1128 = vpop.f32.mrb[0].mxu0
        %1129 = vmatprep.mubr.bf16.mxu0 0
        %1130 = vmatmul.mubr.bf16.gmra.mrb[0].mxu0 %v1039
        %v1131 = vpop.f32.mrb[0].mxu0
        %v1132 = vadd.f32 %v991, %v1131
        %v1133 = vpop.f32.mrb[0].mxu0
        %v1134 = vpop.f32.mrb[0].mxu0
        %v1135 = vadd.f32 %v991, %v1134
        %v1136 = vpop.f32.mrb[0].mxu0
        %1137 = vdwg.mxu0
        %v1138 = vpack.c.bf16 %v1079, %v1076
        %v1139 = vpack.c.bf16 %v1087, %v1084
        %v1140 = vpack.c.bf16 %v1095, %v1092
        %v1141 = vpack.c.bf16 %v1103, %v1100
        %v1142 = vpack.c.bf16 %v1111, %v1108
        %v1143 = vpack.c.bf16 %v1119, %v1116
        %v1144 = vpack.c.bf16 %v1127, %v1124
        %v1145 = vpack.c.bf16 %v1135, %v1132
        %v1146 = vtanh.bf16.pop %v1138
        %v1147 = vtanh.bf16.pop %v1139
        %v1148 = vtanh.bf16.pop %v1140
        %v1149 = vtanh.bf16.pop %v1141
        %v1150 = vtanh.bf16.pop %v1142
        %v1151 = vtanh.bf16.pop %v1143
        %v1152 = vtanh.bf16.pop %v1144
        %v1153 = vtanh.bf16.pop %v1145
        %v1154 = vld [vmem:[#allocation14] sm:$0xff]
        %v1155 = vld [vmem:[#allocation14 + $0x8] sm:$0xff]
        %v1156 = vld [vmem:[#allocation14 + $0x10] sm:$0xff]
        %v1157 = vld [vmem:[#allocation14 + $0x18] sm:$0xff]
        %v1158 = vld [vmem:[#allocation14 + $0x20] sm:$0xff]
        %v1159 = vld [vmem:[#allocation14 + $0x28] sm:$0xff]
        %v1160 = vld [vmem:[#allocation14 + $0x30] sm:$0xff]
        %v1161 = vld [vmem:[#allocation14 + $0x38] sm:$0xff]
        %v1162 = vld [vmem:[#allocation14 + $0x40] sm:$0xff]
        %v1163 = vld [vmem:[#allocation14 + $0x48] sm:$0xff]
        %v1164 = vld [vmem:[#allocation14 + $0x50] sm:$0xff]
        %v1165 = vld [vmem:[#allocation14 + $0x58] sm:$0xff]
        %v1166 = vld [vmem:[#allocation14 + $0x60] sm:$0xff]
        %v1167 = vld [vmem:[#allocation14 + $0x68] sm:$0xff]
        %v1168 = vld [vmem:[#allocation14 + $0x70] sm:$0xff]
        %v1169 = vld [vmem:[#allocation14 + $0x78] sm:$0xff]
        %v1170 = vld [vmem:[#allocation14 + $0x80] sm:$0xff]
        %v1171 = vld [vmem:[#allocation14 + $0x88] sm:$0xff]
        %v1172 = vld [vmem:[#allocation14 + $0x90] sm:$0xff]
        %v1173 = vld [vmem:[#allocation14 + $0x98] sm:$0xff]
        %v1174 = vld [vmem:[#allocation14 + $0xa0] sm:$0xff]
        %v1175 = vld [vmem:[#allocation14 + $0xa8] sm:$0xff]
        %v1176 = vld [vmem:[#allocation14 + $0xb0] sm:$0xff]
        %v1177 = vld [vmem:[#allocation14 + $0xb8] sm:$0xff]
        %v1178 = vld [vmem:[#allocation14 + $0xc0] sm:$0xff]
        %v1179 = vld [vmem:[#allocation14 + $0xc8] sm:$0xff]
        %v1180 = vld [vmem:[#allocation14 + $0xd0] sm:$0xff]
        %v1181 = vld [vmem:[#allocation14 + $0xd8] sm:$0xff]
        %v1182 = vld [vmem:[#allocation14 + $0xe0] sm:$0xff]
        %v1183 = vld [vmem:[#allocation14 + $0xe8] sm:$0xff]
        %v1184 = vld [vmem:[#allocation14 + $0xf0] sm:$0xff]
        %v1185 = vld [vmem:[#allocation14 + $0xf8] sm:$0xff]
        %v1186 = vld [vmem:[#allocation14 + $0x100] sm:$0xff]
        %v1187 = vld [vmem:[#allocation14 + $0x108] sm:$0xff]
        %v1188 = vld [vmem:[#allocation14 + $0x110] sm:$0xff]
        %v1189 = vld [vmem:[#allocation14 + $0x118] sm:$0xff]
        %v1190 = vld [vmem:[#allocation14 + $0x120] sm:$0xff]
        %v1191 = vld [vmem:[#allocation14 + $0x128] sm:$0xff]
        %v1192 = vld [vmem:[#allocation14 + $0x130] sm:$0xff]
        %v1193 = vld [vmem:[#allocation14 + $0x138] sm:$0xff]
        %v1194 = vld [vmem:[#allocation14 + $0x140] sm:$0xff]
        %v1195 = vld [vmem:[#allocation14 + $0x148] sm:$0xff]
        %v1196 = vld [vmem:[#allocation14 + $0x150] sm:$0xff]
        %v1197 = vld [vmem:[#allocation14 + $0x158] sm:$0xff]
        %v1198 = vld [vmem:[#allocation14 + $0x160] sm:$0xff]
        %v1199 = vld [vmem:[#allocation14 + $0x168] sm:$0xff]
        %v1200 = vld [vmem:[#allocation14 + $0x170] sm:$0xff]
        %v1201 = vld [vmem:[#allocation14 + $0x178] sm:$0xff]
        %v1202 = vld [vmem:[#allocation14 + $0x180] sm:$0xff]
        %v1203 = vld [vmem:[#allocation14 + $0x188] sm:$0xff]
        %v1204 = vld [vmem:[#allocation14 + $0x190] sm:$0xff]
        %v1205 = vld [vmem:[#allocation14 + $0x198] sm:$0xff]
        %v1206 = vld [vmem:[#allocation14 + $0x1a0] sm:$0xff]
        %v1207 = vld [vmem:[#allocation14 + $0x1a8] sm:$0xff]
        %v1208 = vld [vmem:[#allocation14 + $0x1b0] sm:$0xff]
        %v1209 = vld [vmem:[#allocation14 + $0x1b8] sm:$0xff]
        %v1210 = vld [vmem:[#allocation14 + $0x1c0] sm:$0xff]
        %v1211 = vld [vmem:[#allocation14 + $0x1c8] sm:$0xff]
        %v1212 = vld [vmem:[#allocation14 + $0x1d0] sm:$0xff]
        %v1213 = vld [vmem:[#allocation14 + $0x1d8] sm:$0xff]
        %v1214 = vld [vmem:[#allocation14 + $0x1e0] sm:$0xff]
        %v1215 = vld [vmem:[#allocation14 + $0x1e8] sm:$0xff]
        %v1216 = vld [vmem:[#allocation14 + $0x1f0] sm:$0xff]
        %v1217 = vld [vmem:[#allocation14 + $0x1f8] sm:$0xff]
        %v1282 = vunpack.c.l.b16 %v1154
        %v1283 = vunpack.c.h.b16 %v1154
        %v1284 = vunpack.c.l.b16 %v1155
        %v1285 = vunpack.c.h.b16 %v1155
        %v1286 = vunpack.c.l.b16 %v1156
        %v1287 = vunpack.c.h.b16 %v1156
        %v1288 = vunpack.c.l.b16 %v1157
        %v1289 = vunpack.c.h.b16 %v1157
        %v1290 = vunpack.c.l.b16 %v1158
        %v1291 = vunpack.c.h.b16 %v1158
        %v1292 = vunpack.c.l.b16 %v1159
        %v1293 = vunpack.c.h.b16 %v1159
        %v1294 = vunpack.c.l.b16 %v1160
        %v1295 = vunpack.c.h.b16 %v1160
        %v1296 = vunpack.c.l.b16 %v1161
        %v1297 = vunpack.c.h.b16 %v1161
        %v1298 = vunpack.c.l.b16 %v1162
        %v1299 = vunpack.c.h.b16 %v1162
        %v1300 = vunpack.c.l.b16 %v1163
        %v1301 = vunpack.c.h.b16 %v1163
        %v1302 = vunpack.c.l.b16 %v1164
        %v1303 = vunpack.c.h.b16 %v1164
        %v1304 = vunpack.c.l.b16 %v1165
        %v1305 = vunpack.c.h.b16 %v1165
        %v1306 = vunpack.c.l.b16 %v1166
        %v1307 = vunpack.c.h.b16 %v1166
        %v1308 = vunpack.c.l.b16 %v1167
        %v1309 = vunpack.c.h.b16 %v1167
        %v1310 = vunpack.c.l.b16 %v1168
        %v1311 = vunpack.c.h.b16 %v1168
        %v1312 = vunpack.c.l.b16 %v1169
        %v1313 = vunpack.c.h.b16 %v1169
        %v1314 = vunpack.c.l.b16 %v1170
        %v1315 = vunpack.c.h.b16 %v1170
        %v1316 = vunpack.c.l.b16 %v1171
        %v1317 = vunpack.c.h.b16 %v1171
        %v1318 = vunpack.c.l.b16 %v1172
        %v1319 = vunpack.c.h.b16 %v1172
        %v1320 = vunpack.c.l.b16 %v1173
        %v1321 = vunpack.c.h.b16 %v1173
        %v1322 = vunpack.c.l.b16 %v1174
        %v1323 = vunpack.c.h.b16 %v1174
        %v1324 = vunpack.c.l.b16 %v1175
        %v1325 = vunpack.c.h.b16 %v1175
        %v1326 = vunpack.c.l.b16 %v1176
        %v1327 = vunpack.c.h.b16 %v1176
        %v1328 = vunpack.c.l.b16 %v1177
        %v1329 = vunpack.c.h.b16 %v1177
        %v1330 = vunpack.c.l.b16 %v1178
        %v1331 = vunpack.c.h.b16 %v1178
        %v1332 = vunpack.c.l.b16 %v1179
        %v1333 = vunpack.c.h.b16 %v1179
        %v1334 = vunpack.c.l.b16 %v1180
        %v1335 = vunpack.c.h.b16 %v1180
        %v1336 = vunpack.c.l.b16 %v1181
        %v1337 = vunpack.c.h.b16 %v1181
        %v1338 = vunpack.c.l.b16 %v1182
        %v1339 = vunpack.c.h.b16 %v1182
        %v1340 = vunpack.c.l.b16 %v1183
        %v1341 = vunpack.c.h.b16 %v1183
        %v1342 = vunpack.c.l.b16 %v1184
        %v1343 = vunpack.c.h.b16 %v1184
        %v1344 = vunpack.c.l.b16 %v1185
        %v1345 = vunpack.c.h.b16 %v1185
        %v1346 = vunpack.c.l.b16 %v1186
        %v1347 = vunpack.c.h.b16 %v1186
        %v1348 = vunpack.c.l.b16 %v1187
        %v1349 = vunpack.c.h.b16 %v1187
        %v1350 = vunpack.c.l.b16 %v1188
        %v1351 = vunpack.c.h.b16 %v1188
        %v1352 = vunpack.c.l.b16 %v1189
        %v1353 = vunpack.c.h.b16 %v1189
        %v1354 = vunpack.c.l.b16 %v1190
        %v1355 = vunpack.c.h.b16 %v1190
        %v1356 = vunpack.c.l.b16 %v1191
        %v1357 = vunpack.c.h.b16 %v1191
        %v1358 = vunpack.c.l.b16 %v1192
        %v1359 = vunpack.c.h.b16 %v1192
        %v1360 = vunpack.c.l.b16 %v1193
        %v1361 = vunpack.c.h.b16 %v1193
        %v1362 = vunpack.c.l.b16 %v1194
        %v1363 = vunpack.c.h.b16 %v1194
        %v1364 = vunpack.c.l.b16 %v1195
        %v1365 = vunpack.c.h.b16 %v1195
        %v1366 = vunpack.c.l.b16 %v1196
        %v1367 = vunpack.c.h.b16 %v1196
        %v1368 = vunpack.c.l.b16 %v1197
        %v1369 = vunpack.c.h.b16 %v1197
        %v1370 = vunpack.c.l.b16 %v1198
        %v1371 = vunpack.c.h.b16 %v1198
        %v1372 = vunpack.c.l.b16 %v1199
        %v1373 = vunpack.c.h.b16 %v1199
        %v1374 = vunpack.c.l.b16 %v1200
        %v1375 = vunpack.c.h.b16 %v1200
        %v1376 = vunpack.c.l.b16 %v1201
        %v1377 = vunpack.c.h.b16 %v1201
        %v1378 = vunpack.c.l.b16 %v1202
        %v1379 = vunpack.c.h.b16 %v1202
        %v1380 = vunpack.c.l.b16 %v1203
        %v1381 = vunpack.c.h.b16 %v1203
        %v1382 = vunpack.c.l.b16 %v1204
        %v1383 = vunpack.c.h.b16 %v1204
        %v1384 = vunpack.c.l.b16 %v1205
        %v1385 = vunpack.c.h.b16 %v1205
        %v1386 = vunpack.c.l.b16 %v1206
        %v1387 = vunpack.c.h.b16 %v1206
        %v1388 = vunpack.c.l.b16 %v1207
        %v1389 = vunpack.c.h.b16 %v1207
        %v1390 = vunpack.c.l.b16 %v1208
        %v1391 = vunpack.c.h.b16 %v1208
        %v1392 = vunpack.c.l.b16 %v1209
        %v1393 = vunpack.c.h.b16 %v1209
        %v1394 = vunpack.c.l.b16 %v1210
        %v1395 = vunpack.c.h.b16 %v1210
        %v1396 = vunpack.c.l.b16 %v1211
        %v1397 = vunpack.c.h.b16 %v1211
        %v1398 = vunpack.c.l.b16 %v1212
        %v1399 = vunpack.c.h.b16 %v1212
        %v1400 = vunpack.c.l.b16 %v1213
        %v1401 = vunpack.c.h.b16 %v1213
        %v1402 = vunpack.c.l.b16 %v1214
        %v1403 = vunpack.c.h.b16 %v1214
        %v1404 = vunpack.c.l.b16 %v1215
        %v1405 = vunpack.c.h.b16 %v1215
        %v1406 = vunpack.c.l.b16 %v1216
        %v1407 = vunpack.c.h.b16 %v1216
        %v1408 = vunpack.c.l.b16 %v1217
        %v1409 = vunpack.c.h.b16 %v1217
        %v1410 = vpack.c.b16 %v1290, %v1282
        %v1411 = vpack.c.b16 %v1291, %v1283
        %v1412 = vpack.c.b16 %v1292, %v1284
        %v1413 = vpack.c.b16 %v1293, %v1285
        %v1414 = vpack.c.b16 %v1294, %v1286
        %v1415 = vpack.c.b16 %v1295, %v1287
        %v1416 = vpack.c.b16 %v1296, %v1288
        %v1417 = vpack.c.b16 %v1297, %v1289
        %v1418 = vpack.c.b16 %v1306, %v1298
        %v1419 = vpack.c.b16 %v1307, %v1299
        %v1420 = vpack.c.b16 %v1308, %v1300
        %v1421 = vpack.c.b16 %v1309, %v1301
        %v1422 = vpack.c.b16 %v1310, %v1302
        %v1423 = vpack.c.b16 %v1311, %v1303
        %v1424 = vpack.c.b16 %v1312, %v1304
        %v1425 = vpack.c.b16 %v1313, %v1305
        %v1426 = vpack.c.b16 %v1322, %v1314
        %v1427 = vpack.c.b16 %v1323, %v1315
        %v1428 = vpack.c.b16 %v1324, %v1316
        %v1429 = vpack.c.b16 %v1325, %v1317
        %v1430 = vpack.c.b16 %v1326, %v1318
        %v1431 = vpack.c.b16 %v1327, %v1319
        %v1432 = vpack.c.b16 %v1328, %v1320
        %v1433 = vpack.c.b16 %v1329, %v1321
        %v1434 = vpack.c.b16 %v1338, %v1330
        %v1435 = vpack.c.b16 %v1339, %v1331
        %v1436 = vpack.c.b16 %v1340, %v1332
        %v1437 = vpack.c.b16 %v1341, %v1333
        %v1438 = vpack.c.b16 %v1342, %v1334
        %v1439 = vpack.c.b16 %v1343, %v1335
        %v1440 = vpack.c.b16 %v1344, %v1336
        %v1441 = vpack.c.b16 %v1345, %v1337
        %v1442 = vpack.c.b16 %v1354, %v1346
        %v1443 = vpack.c.b16 %v1355, %v1347
        %v1444 = vpack.c.b16 %v1356, %v1348
        %v1445 = vpack.c.b16 %v1357, %v1349
        %v1446 = vpack.c.b16 %v1358, %v1350
        %v1447 = vpack.c.b16 %v1359, %v1351
        %v1448 = vpack.c.b16 %v1360, %v1352
        %v1449 = vpack.c.b16 %v1361, %v1353
        %v1450 = vpack.c.b16 %v1370, %v1362
        %v1451 = vpack.c.b16 %v1371, %v1363
        %v1452 = vpack.c.b16 %v1372, %v1364
        %v1453 = vpack.c.b16 %v1373, %v1365
        %v1454 = vpack.c.b16 %v1374, %v1366
        %v1455 = vpack.c.b16 %v1375, %v1367
        %v1456 = vpack.c.b16 %v1376, %v1368
        %v1457 = vpack.c.b16 %v1377, %v1369
        %v1458 = vpack.c.b16 %v1386, %v1378
        %v1459 = vpack.c.b16 %v1387, %v1379
        %v1460 = vpack.c.b16 %v1388, %v1380
        %v1461 = vpack.c.b16 %v1389, %v1381
        %v1462 = vpack.c.b16 %v1390, %v1382
        %v1463 = vpack.c.b16 %v1391, %v1383
        %v1464 = vpack.c.b16 %v1392, %v1384
        %v1465 = vpack.c.b16 %v1393, %v1385
        %v1466 = vpack.c.b16 %v1402, %v1394
        %v1467 = vpack.c.b16 %v1403, %v1395
        %v1468 = vpack.c.b16 %v1404, %v1396
        %v1469 = vpack.c.b16 %v1405, %v1397
        %v1470 = vpack.c.b16 %v1406, %v1398
        %v1471 = vpack.c.b16 %v1407, %v1399
        %v1472 = vpack.c.b16 %v1408, %v1400
        %v1473 = vpack.c.b16 %v1409, %v1401
        %1538 = vmatprep.subr.bf16.mxu0 %v1411
        %1539 = vmatpush1.bf16.msra.mxu0 %v1410
        %1540 = vmatprep.subr.bf16.mxu0 %v1419
        %1541 = vmatpush1.bf16.msra.mxu0 %v1418
        %1542 = vmatprep.subr.bf16.mxu0 %v1427
        %1543 = vmatpush1.bf16.msra.mxu0 %v1426
        %1544 = vmatprep.subr.bf16.mxu0 %v1435
        %1545 = vmatpush1.bf16.msra.mxu0 %v1434
        %1546 = vmatprep.subr.bf16.mxu0 %v1443
        %1547 = vmatpush1.bf16.msra.mxu0 %v1442
        %1548 = vmatprep.subr.bf16.mxu0 %v1451
        %1549 = vmatpush1.bf16.msra.mxu0 %v1450
        %1550 = vmatprep.subr.bf16.mxu0 %v1459
        %1551 = vmatpush1.bf16.msra.mxu0 %v1458
        %1552 = vmatprep.subr.bf16.mxu0 %v1467
        %1553 = vmatpush1.bf16.msra.mxu0 %v1466
        %1554 = vmatprep.subr.bf16.mxu0 0
        %1555 = vmatpush1.bf16.msra.mxu0 0
        %1556 = vmatprep.subr.bf16.mxu0 0
        %1557 = vmatpush1.bf16.msra.mxu0 0
        %1558 = vmatprep.subr.bf16.mxu0 0
        %1559 = vmatpush1.bf16.msra.mxu0 0
        %1560 = vmatprep.subr.bf16.mxu0 0
        %1561 = vmatpush1.bf16.msra.mxu0 0
        %1562 = vmatprep.subr.bf16.mxu0 0
        %1563 = vmatpush1.bf16.msra.mxu0 0
        %1564 = vmatprep.subr.bf16.mxu0 0
        %1565 = vmatpush1.bf16.msra.mxu0 0
        %1566 = vmatprep.subr.bf16.mxu0 0
        %1567 = vmatpush1.bf16.msra.mxu0 0
        %1568 = vmatprep.subr.bf16.mxu0 0
        %1569 = vmatpush1.bf16.msra.mxu0 0
        %1570 = vmatprep.mubr.bf16.mxu0 0
        %1571 = vmatmul.mubr.bf16.gmra.mrb[0].mxu0 %v1146
        %v1572 = vpop.f32.mrb[0].mxu0
        %v1573 = vadd.f32 0.0, %v1572
        %v1574 = vpop.f32.mrb[0].mxu0
        %v1575 = vadd.f32 0.0, %v1574
        %v1576 = vpop.f32.mrb[0].mxu0
        %v1577 = vadd.f32 0.0, %v1576
        %v1578 = vpop.f32.mrb[0].mxu0
        %v1579 = vadd.f32 0.0, %v1578
        %1580 = vmatprep.mubr.bf16.mxu0 0
        %1581 = vmatmul.mubr.bf16.gmra.mrb[0].mxu0 %v1147
        %v1582 = vpop.f32.mrb[0].mxu0
        %v1583 = vadd.f32 0.0, %v1582
        %v1584 = vpop.f32.mrb[0].mxu0
        %v1585 = vadd.f32 0.0, %v1584
        %v1586 = vpop.f32.mrb[0].mxu0
        %v1587 = vadd.f32 0.0, %v1586
        %v1588 = vpop.f32.mrb[0].mxu0
        %v1589 = vadd.f32 0.0, %v1588
        %1590 = vmatprep.mubr.bf16.mxu0 0
        %1591 = vmatmul.mubr.bf16.gmra.mrb[0].mxu0 %v1148
        %v1592 = vpop.f32.mrb[0].mxu0
        %v1593 = vadd.f32 0.0, %v1592
        %v1594 = vpop.f32.mrb[0].mxu0
        %v1595 = vadd.f32 0.0, %v1594
        %v1596 = vpop.f32.mrb[0].mxu0
        %v1597 = vadd.f32 0.0, %v1596
        %v1598 = vpop.f32.mrb[0].mxu0
        %v1599 = vadd.f32 0.0, %v1598
        %1600 = vmatprep.mubr.bf16.mxu0 0
        %1601 = vmatmul.mubr.bf16.gmra.mrb[0].mxu0 %v1149
        %v1602 = vpop.f32.mrb[0].mxu0
        %v1603 = vadd.f32 0.0, %v1602
        %v1604 = vpop.f32.mrb[0].mxu0
        %v1605 = vadd.f32 0.0, %v1604
        %v1606 = vpop.f32.mrb[0].mxu0
        %v1607 = vadd.f32 0.0, %v1606
        %v1608 = vpop.f32.mrb[0].mxu0
        %v1609 = vadd.f32 0.0, %v1608
        %1610 = vmatprep.mubr.bf16.mxu0 0
        %1611 = vmatmul.mubr.bf16.gmra.mrb[0].mxu0 %v1150
        %v1612 = vpop.f32.mrb[0].mxu0
        %v1613 = vadd.f32 0.0, %v1612
        %v1614 = vpop.f32.mrb[0].mxu0
        %v1615 = vadd.f32 0.0, %v1614
        %v1616 = vpop.f32.mrb[0].mxu0
        %v1617 = vadd.f32 0.0, %v1616
        %v1618 = vpop.f32.mrb[0].mxu0
        %v1619 = vadd.f32 0.0, %v1618
        %1620 = vmatprep.mubr.bf16.mxu0 0
        %1621 = vmatmul.mubr.bf16.gmra.mrb[0].mxu0 %v1151
        %v1622 = vpop.f32.mrb[0].mxu0
        %v1623 = vadd.f32 0.0, %v1622
        %v1624 = vpop.f32.mrb[0].mxu0
        %v1625 = vadd.f32 0.0, %v1624
        %v1626 = vpop.f32.mrb[0].mxu0
        %v1627 = vadd.f32 0.0, %v1626
        %v1628 = vpop.f32.mrb[0].mxu0
        %v1629 = vadd.f32 0.0, %v1628
        %1630 = vmatprep.mubr.bf16.mxu0 0
        %1631 = vmatmul.mubr.bf16.gmra.mrb[0].mxu0 %v1152
        %v1632 = vpop.f32.mrb[0].mxu0
        %v1633 = vadd.f32 0.0, %v1632
        %v1634 = vpop.f32.mrb[0].mxu0
        %v1635 = vadd.f32 0.0, %v1634
        %v1636 = vpop.f32.mrb[0].mxu0
        %v1637 = vadd.f32 0.0, %v1636
        %v1638 = vpop.f32.mrb[0].mxu0
        %v1639 = vadd.f32 0.0, %v1638
        %1640 = vmatprep.mubr.bf16.mxu0 0
        %1641 = vmatmul.mubr.bf16.gmra.mrb[0].mxu0 %v1153
        %v1642 = vpop.f32.mrb[0].mxu0
        %v1643 = vadd.f32 0.0, %v1642
        %v1644 = vpop.f32.mrb[0].mxu0
        %v1645 = vadd.f32 0.0, %v1644
        %v1646 = vpop.f32.mrb[0].mxu0
        %v1647 = vadd.f32 0.0, %v1646
        %v1648 = vpop.f32.mrb[0].mxu0
        %v1649 = vadd.f32 0.0, %v1648
        %1650 = vdwg.mxu0
        %1651 = vmatprep.subr.bf16.mxu0 %v1413
        %1652 = vmatpush1.bf16.msra.mxu0 %v1412
        %1653 = vmatprep.subr.bf16.mxu0 %v1421
        %1654 = vmatpush1.bf16.msra.mxu0 %v1420
        %1655 = vmatprep.subr.bf16.mxu0 %v1429
        %1656 = vmatpush1.bf16.msra.mxu0 %v1428
        %1657 = vmatprep.subr.bf16.mxu0 %v1437
        %1658 = vmatpush1.bf16.msra.mxu0 %v1436
        %1659 = vmatprep.subr.bf16.mxu0 %v1445
        %1660 = vmatpush1.bf16.msra.mxu0 %v1444
        %1661 = vmatprep.subr.bf16.mxu0 %v1453
        %1662 = vmatpush1.bf16.msra.mxu0 %v1452
        %1663 = vmatprep.subr.bf16.mxu0 %v1461
        %1664 = vmatpush1.bf16.msra.mxu0 %v1460
        %1665 = vmatprep.subr.bf16.mxu0 %v1469
        %1666 = vmatpush1.bf16.msra.mxu0 %v1468
        %1667 = vmatprep.subr.bf16.mxu0 0
        %1668 = vmatpush1.bf16.msra.mxu0 0
        %1669 = vmatprep.subr.bf16.mxu0 0
        %1670 = vmatpush1.bf16.msra.mxu0 0
        %1671 = vmatprep.subr.bf16.mxu0 0
        %1672 = vmatpush1.bf16.msra.mxu0 0
        %1673 = vmatprep.subr.bf16.mxu0 0
        %1674 = vmatpush1.bf16.msra.mxu0 0
        %1675 = vmatprep.subr.bf16.mxu0 0
        %1676 = vmatpush1.bf16.msra.mxu0 0
        %1677 = vmatprep.subr.bf16.mxu0 0
        %1678 = vmatpush1.bf16.msra.mxu0 0
        %1679 = vmatprep.subr.bf16.mxu0 0
        %1680 = vmatpush1.bf16.msra.mxu0 0
        %1681 = vmatprep.subr.bf16.mxu0 0
        %1682 = vmatpush1.bf16.msra.mxu0 0
        %1683 = vmatprep.mubr.bf16.mxu0 0
        %1684 = vmatmul.mubr.bf16.gmra.mrb[0].mxu0 %v1146
        %v1685 = vpop.f32.mrb[0].mxu0
        %v1686 = vadd.f32 0.0, %v1685
        %v1687 = vpop.f32.mrb[0].mxu0
        %v1688 = vadd.f32 0.0, %v1687
        %v1689 = vpop.f32.mrb[0].mxu0
        %v1690 = vadd.f32 0.0, %v1689
        %v1691 = vpop.f32.mrb[0].mxu0
        %v1692 = vadd.f32 0.0, %v1691
        %1693 = vmatprep.mubr.bf16.mxu0 0
        %1694 = vmatmul.mubr.bf16.gmra.mrb[0].mxu0 %v1147
        %v1695 = vpop.f32.mrb[0].mxu0
        %v1696 = vadd.f32 0.0, %v1695
        %v1697 = vpop.f32.mrb[0].mxu0
        %v1698 = vadd.f32 0.0, %v1697
        %v1699 = vpop.f32.mrb[0].mxu0
        %v1700 = vadd.f32 0.0, %v1699
        %v1701 = vpop.f32.mrb[0].mxu0
        %v1702 = vadd.f32 0.0, %v1701
        %1703 = vmatprep.mubr.bf16.mxu0 0
        %1704 = vmatmul.mubr.bf16.gmra.mrb[0].mxu0 %v1148
        %v1705 = vpop.f32.mrb[0].mxu0
        %v1706 = vadd.f32 0.0, %v1705
        %v1707 = vpop.f32.mrb[0].mxu0
        %v1708 = vadd.f32 0.0, %v1707
        %v1709 = vpop.f32.mrb[0].mxu0
        %v1710 = vadd.f32 0.0, %v1709
        %v1711 = vpop.f32.mrb[0].mxu0
        %v1712 = vadd.f32 0.0, %v1711
        %1713 = vmatprep.mubr.bf16.mxu0 0
        %1714 = vmatmul.mubr.bf16.gmra.mrb[0].mxu0 %v1149
        %v1715 = vpop.f32.mrb[0].mxu0
        %v1716 = vadd.f32 0.0, %v1715
        %v1717 = vpop.f32.mrb[0].mxu0
        %v1718 = vadd.f32 0.0, %v1717
        %v1719 = vpop.f32.mrb[0].mxu0
        %v1720 = vadd.f32 0.0, %v1719
        %v1721 = vpop.f32.mrb[0].mxu0
        %v1722 = vadd.f32 0.0, %v1721
        %1723 = vmatprep.mubr.bf16.mxu0 0
        %1724 = vmatmul.mubr.bf16.gmra.mrb[0].mxu0 %v1150
        %v1725 = vpop.f32.mrb[0].mxu0
        %v1726 = vadd.f32 0.0, %v1725
        %v1727 = vpop.f32.mrb[0].mxu0
        %v1728 = vadd.f32 0.0, %v1727
        %v1729 = vpop.f32.mrb[0].mxu0
        %v1730 = vadd.f32 0.0, %v1729
        %v1731 = vpop.f32.mrb[0].mxu0
        %v1732 = vadd.f32 0.0, %v1731
        %1733 = vmatprep.mubr.bf16.mxu0 0
        %1734 = vmatmul.mubr.bf16.gmra.mrb[0].mxu0 %v1151
        %v1735 = vpop.f32.mrb[0].mxu0
        %v1736 = vadd.f32 0.0, %v1735
        %v1737 = vpop.f32.mrb[0].mxu0
        %v1738 = vadd.f32 0.0, %v1737
        %v1739 = vpop.f32.mrb[0].mxu0
        %v1740 = vadd.f32 0.0, %v1739
        %v1741 = vpop.f32.mrb[0].mxu0
        %v1742 = vadd.f32 0.0, %v1741
        %1743 = vmatprep.mubr.bf16.mxu0 0
        %1744 = vmatmul.mubr.bf16.gmra.mrb[0].mxu0 %v1152
        %v1745 = vpop.f32.mrb[0].mxu0
        %v1746 = vadd.f32 0.0, %v1745
        %v1747 = vpop.f32.mrb[0].mxu0
        %v1748 = vadd.f32 0.0, %v1747
        %v1749 = vpop.f32.mrb[0].mxu0
        %v1750 = vadd.f32 0.0, %v1749
        %v1751 = vpop.f32.mrb[0].mxu0
        %v1752 = vadd.f32 0.0, %v1751
        %1753 = vmatprep.mubr.bf16.mxu0 0
        %1754 = vmatmul.mubr.bf16.gmra.mrb[0].mxu0 %v1153
        %v1755 = vpop.f32.mrb[0].mxu0
        %v1756 = vadd.f32 0.0, %v1755
        %v1757 = vpop.f32.mrb[0].mxu0
        %v1758 = vadd.f32 0.0, %v1757
        %v1759 = vpop.f32.mrb[0].mxu0
        %v1760 = vadd.f32 0.0, %v1759
        %v1761 = vpop.f32.mrb[0].mxu0
        %v1762 = vadd.f32 0.0, %v1761
        %1763 = vdwg.mxu0
        %1764 = vmatprep.subr.bf16.mxu0 %v1415
        %1765 = vmatpush1.bf16.msra.mxu0 %v1414
        %1766 = vmatprep.subr.bf16.mxu0 %v1423
        %1767 = vmatpush1.bf16.msra.mxu0 %v1422
        %1768 = vmatprep.subr.bf16.mxu0 %v1431
        %1769 = vmatpush1.bf16.msra.mxu0 %v1430
        %1770 = vmatprep.subr.bf16.mxu0 %v1439
        %1771 = vmatpush1.bf16.msra.mxu0 %v1438
        %1772 = vmatprep.subr.bf16.mxu0 %v1447
        %1773 = vmatpush1.bf16.msra.mxu0 %v1446
        %1774 = vmatprep.subr.bf16.mxu0 %v1455
        %1775 = vmatpush1.bf16.msra.mxu0 %v1454
        %1776 = vmatprep.subr.bf16.mxu0 %v1463
        %1777 = vmatpush1.bf16.msra.mxu0 %v1462
        %1778 = vmatprep.subr.bf16.mxu0 %v1471
        %1779 = vmatpush1.bf16.msra.mxu0 %v1470
        %1780 = vmatprep.subr.bf16.mxu0 0
        %1781 = vmatpush1.bf16.msra.mxu0 0
        %1782 = vmatprep.subr.bf16.mxu0 0
        %1783 = vmatpush1.bf16.msra.mxu0 0
        %1784 = vmatprep.subr.bf16.mxu0 0
        %1785 = vmatpush1.bf16.msra.mxu0 0
        %1786 = vmatprep.subr.bf16.mxu0 0
        %1787 = vmatpush1.bf16.msra.mxu0 0
        %1788 = vmatprep.subr.bf16.mxu0 0
        %1789 = vmatpush1.bf16.msra.mxu0 0
        %1790 = vmatprep.subr.bf16.mxu0 0
        %1791 = vmatpush1.bf16.msra.mxu0 0
        %1792 = vmatprep.subr.bf16.mxu0 0
        %1793 = vmatpush1.bf16.msra.mxu0 0
        %1794 = vmatprep.subr.bf16.mxu0 0
        %1795 = vmatpush1.bf16.msra.mxu0 0
        %1796 = vmatprep.mubr.bf16.mxu0 0
        %1797 = vmatmul.mubr.bf16.gmra.mrb[0].mxu0 %v1146
        %v1798 = vpop.f32.mrb[0].mxu0
        %v1799 = vadd.f32 0.0, %v1798
        %v1800 = vpop.f32.mrb[0].mxu0
        %v1801 = vadd.f32 0.0, %v1800
        %v1802 = vpop.f32.mrb[0].mxu0
        %v1803 = vadd.f32 0.0, %v1802
        %v1804 = vpop.f32.mrb[0].mxu0
        %v1805 = vadd.f32 0.0, %v1804
        %1806 = vmatprep.mubr.bf16.mxu0 0
        %1807 = vmatmul.mubr.bf16.gmra.mrb[0].mxu0 %v1147
        %v1808 = vpop.f32.mrb[0].mxu0
        %v1809 = vadd.f32 0.0, %v1808
        %v1810 = vpop.f32.mrb[0].mxu0
        %v1811 = vadd.f32 0.0, %v1810
        %v1812 = vpop.f32.mrb[0].mxu0
        %v1813 = vadd.f32 0.0, %v1812
        %v1814 = vpop.f32.mrb[0].mxu0
        %v1815 = vadd.f32 0.0, %v1814
        %1816 = vmatprep.mubr.bf16.mxu0 0
        %1817 = vmatmul.mubr.bf16.gmra.mrb[0].mxu0 %v1148
        %v1818 = vpop.f32.mrb[0].mxu0
        %v1819 = vadd.f32 0.0, %v1818
        %v1820 = vpop.f32.mrb[0].mxu0
        %v1821 = vadd.f32 0.0, %v1820
        %v1822 = vpop.f32.mrb[0].mxu0
        %v1823 = vadd.f32 0.0, %v1822
        %v1824 = vpop.f32.mrb[0].mxu0
        %v1825 = vadd.f32 0.0, %v1824
        %1826 = vmatprep.mubr.bf16.mxu0 0
        %1827 = vmatmul.mubr.bf16.gmra.mrb[0].mxu0 %v1149
        %v1828 = vpop.f32.mrb[0].mxu0
        %v1829 = vadd.f32 0.0, %v1828
        %v1830 = vpop.f32.mrb[0].mxu0
        %v1831 = vadd.f32 0.0, %v1830
        %v1832 = vpop.f32.mrb[0].mxu0
        %v1833 = vadd.f32 0.0, %v1832
        %v1834 = vpop.f32.mrb[0].mxu0
        %v1835 = vadd.f32 0.0, %v1834
        %1836 = vmatprep.mubr.bf16.mxu0 0
        %1837 = vmatmul.mubr.bf16.gmra.mrb[0].mxu0 %v1150
        %v1838 = vpop.f32.mrb[0].mxu0
        %v1839 = vadd.f32 0.0, %v1838
        %v1840 = vpop.f32.mrb[0].mxu0
        %v1841 = vadd.f32 0.0, %v1840
        %v1842 = vpop.f32.mrb[0].mxu0
        %v1843 = vadd.f32 0.0, %v1842
        %v1844 = vpop.f32.mrb[0].mxu0
        %v1845 = vadd.f32 0.0, %v1844
        %1846 = vmatprep.mubr.bf16.mxu0 0
        %1847 = vmatmul.mubr.bf16.gmra.mrb[0].mxu0 %v1151
        %v1848 = vpop.f32.mrb[0].mxu0
        %v1849 = vadd.f32 0.0, %v1848
        %v1850 = vpop.f32.mrb[0].mxu0
        %v1851 = vadd.f32 0.0, %v1850
        %v1852 = vpop.f32.mrb[0].mxu0
        %v1853 = vadd.f32 0.0, %v1852
        %v1854 = vpop.f32.mrb[0].mxu0
        %v1855 = vadd.f32 0.0, %v1854
        %1856 = vmatprep.mubr.bf16.mxu0 0
        %1857 = vmatmul.mubr.bf16.gmra.mrb[0].mxu0 %v1152
        %v1858 = vpop.f32.mrb[0].mxu0
        %v1859 = vadd.f32 0.0, %v1858
        %v1860 = vpop.f32.mrb[0].mxu0
        %v1861 = vadd.f32 0.0, %v1860
        %v1862 = vpop.f32.mrb[0].mxu0
        %v1863 = vadd.f32 0.0, %v1862
        %v1864 = vpop.f32.mrb[0].mxu0
        %v1865 = vadd.f32 0.0, %v1864
        %1866 = vmatprep.mubr.bf16.mxu0 0
        %1867 = vmatmul.mubr.bf16.gmra.mrb[0].mxu0 %v1153
        %v1868 = vpop.f32.mrb[0].mxu0
        %v1869 = vadd.f32 0.0, %v1868
        %v1870 = vpop.f32.mrb[0].mxu0
        %v1871 = vadd.f32 0.0, %v1870
        %v1872 = vpop.f32.mrb[0].mxu0
        %v1873 = vadd.f32 0.0, %v1872
        %v1874 = vpop.f32.mrb[0].mxu0
        %v1875 = vadd.f32 0.0, %v1874
        %1876 = vdwg.mxu0
        %1877 = vmatprep.subr.bf16.mxu0 %v1417
        %1878 = vmatpush1.bf16.msra.mxu0 %v1416
        %1879 = vmatprep.subr.bf16.mxu0 %v1425
        %1880 = vmatpush1.bf16.msra.mxu0 %v1424
        %1881 = vmatprep.subr.bf16.mxu0 %v1433
        %1882 = vmatpush1.bf16.msra.mxu0 %v1432
        %1883 = vmatprep.subr.bf16.mxu0 %v1441
        %1884 = vmatpush1.bf16.msra.mxu0 %v1440
        %1885 = vmatprep.subr.bf16.mxu0 %v1449
        %1886 = vmatpush1.bf16.msra.mxu0 %v1448
        %1887 = vmatprep.subr.bf16.mxu0 %v1457
        %1888 = vmatpush1.bf16.msra.mxu0 %v1456
        %1889 = vmatprep.subr.bf16.mxu0 %v1465
        %1890 = vmatpush1.bf16.msra.mxu0 %v1464
        %1891 = vmatprep.subr.bf16.mxu0 %v1473
        %1892 = vmatpush1.bf16.msra.mxu0 %v1472
        %1893 = vmatprep.subr.bf16.mxu0 0
        %1894 = vmatpush1.bf16.msra.mxu0 0
        %1895 = vmatprep.subr.bf16.mxu0 0
        %1896 = vmatpush1.bf16.msra.mxu0 0
        %1897 = vmatprep.subr.bf16.mxu0 0
        %1898 = vmatpush1.bf16.msra.mxu0 0
        %1899 = vmatprep.subr.bf16.mxu0 0
        %1900 = vmatpush1.bf16.msra.mxu0 0
        %1901 = vmatprep.subr.bf16.mxu0 0
        %1902 = vmatpush1.bf16.msra.mxu0 0
        %1903 = vmatprep.subr.bf16.mxu0 0
        %1904 = vmatpush1.bf16.msra.mxu0 0
        %1905 = vmatprep.subr.bf16.mxu0 0
        %1906 = vmatpush1.bf16.msra.mxu0 0
        %1907 = vmatprep.subr.bf16.mxu0 0
        %1908 = vmatpush1.bf16.msra.mxu0 0
        %1909 = vmatprep.mubr.bf16.mxu0 0
        %1910 = vmatmul.mubr.bf16.gmra.mrb[0].mxu0 %v1146
        %v1911 = vpop.f32.mrb[0].mxu0
        %v1912 = vadd.f32 0.0, %v1911
        %v1913 = vpop.f32.mrb[0].mxu0
        %v1914 = vadd.f32 0.0, %v1913
        %v1915 = vpop.f32.mrb[0].mxu0
        %v1916 = vadd.f32 0.0, %v1915
        %v1917 = vpop.f32.mrb[0].mxu0
        %v1918 = vadd.f32 0.0, %v1917
        %1919 = vmatprep.mubr.bf16.mxu0 0
        %1920 = vmatmul.mubr.bf16.gmra.mrb[0].mxu0 %v1147
        %v1921 = vpop.f32.mrb[0].mxu0
        %v1922 = vadd.f32 0.0, %v1921
        %v1923 = vpop.f32.mrb[0].mxu0
        %v1924 = vadd.f32 0.0, %v1923
        %v1925 = vpop.f32.mrb[0].mxu0
        %v1926 = vadd.f32 0.0, %v1925
        %v1927 = vpop.f32.mrb[0].mxu0
        %v1928 = vadd.f32 0.0, %v1927
        %1929 = vmatprep.mubr.bf16.mxu0 0
        %1930 = vmatmul.mubr.bf16.gmra.mrb[0].mxu0 %v1148
        %v1931 = vpop.f32.mrb[0].mxu0
        %v1932 = vadd.f32 0.0, %v1931
        %v1933 = vpop.f32.mrb[0].mxu0
        %v1934 = vadd.f32 0.0, %v1933
        %v1935 = vpop.f32.mrb[0].mxu0
        %v1936 = vadd.f32 0.0, %v1935
        %v1937 = vpop.f32.mrb[0].mxu0
        %v1938 = vadd.f32 0.0, %v1937
        %1939 = vmatprep.mubr.bf16.mxu0 0
        %1940 = vmatmul.mubr.bf16.gmra.mrb[0].mxu0 %v1149
        %v1941 = vpop.f32.mrb[0].mxu0
        %v1942 = vadd.f32 0.0, %v1941
        %v1943 = vpop.f32.mrb[0].mxu0
        %v1944 = vadd.f32 0.0, %v1943
        %v1945 = vpop.f32.mrb[0].mxu0
        %v1946 = vadd.f32 0.0, %v1945
        %v1947 = vpop.f32.mrb[0].mxu0
        %v1948 = vadd.f32 0.0, %v1947
        %1949 = vmatprep.mubr.bf16.mxu0 0
        %1950 = vmatmul.mubr.bf16.gmra.mrb[0].mxu0 %v1150
        %v1951 = vpop.f32.mrb[0].mxu0
        %v1952 = vadd.f32 0.0, %v1951
        %v1953 = vpop.f32.mrb[0].mxu0
        %v1954 = vadd.f32 0.0, %v1953
        %v1955 = vpop.f32.mrb[0].mxu0
        %v1956 = vadd.f32 0.0, %v1955
        %v1957 = vpop.f32.mrb[0].mxu0
        %v1958 = vadd.f32 0.0, %v1957
        %1959 = vmatprep.mubr.bf16.mxu0 0
        %1960 = vmatmul.mubr.bf16.gmra.mrb[0].mxu0 %v1151
        %v1961 = vpop.f32.mrb[0].mxu0
        %v1962 = vadd.f32 0.0, %v1961
        %v1963 = vpop.f32.mrb[0].mxu0
        %v1964 = vadd.f32 0.0, %v1963
        %v1965 = vpop.f32.mrb[0].mxu0
        %v1966 = vadd.f32 0.0, %v1965
        %v1967 = vpop.f32.mrb[0].mxu0
        %v1968 = vadd.f32 0.0, %v1967
        %1969 = vmatprep.mubr.bf16.mxu0 0
        %1970 = vmatmul.mubr.bf16.gmra.mrb[0].mxu0 %v1152
        %v1971 = vpop.f32.mrb[0].mxu0
        %v1972 = vadd.f32 0.0, %v1971
        %v1973 = vpop.f32.mrb[0].mxu0
        %v1974 = vadd.f32 0.0, %v1973
        %v1975 = vpop.f32.mrb[0].mxu0
        %v1976 = vadd.f32 0.0, %v1975
        %v1977 = vpop.f32.mrb[0].mxu0
        %v1978 = vadd.f32 0.0, %v1977
        %1979 = vmatprep.mubr.bf16.mxu0 0
        %1980 = vmatmul.mubr.bf16.gmra.mrb[0].mxu0 %v1153
        %v1981 = vpop.f32.mrb[0].mxu0
        %v1982 = vadd.f32 0.0, %v1981
        %v1983 = vpop.f32.mrb[0].mxu0
        %v1984 = vadd.f32 0.0, %v1983
        %v1985 = vpop.f32.mrb[0].mxu0
        %v1986 = vadd.f32 0.0, %v1985
        %v1987 = vpop.f32.mrb[0].mxu0
        %v1988 = vadd.f32 0.0, %v1987
        %1989 = vdwg.mxu0
        %v1990 = vmax.f32 %v1573, %v1577
        %v1991 = vmax.f32 %v1990, %v1583
        %v1992 = vmax.f32 %v1991, %v1587
        %v1993 = vmax.f32 %v1992, %v1593
        %v1994 = vmax.f32 %v1993, %v1597
        %v1995 = vmax.f32 %v1994, %v1603
        %v1996 = vmax.f32 %v1995, %v1607
        %v1997 = vmax.f32 %v1996, %v1613
        %v1998 = vmax.f32 %v1997, %v1617
        %v1999 = vmax.f32 %v1998, %v1623
        %v2000 = vmax.f32 %v1999, %v1627
        %v2001 = vmax.f32 %v2000, %v1633
        %v2002 = vmax.f32 %v2001, %v1637
        %v2003 = vmax.f32 %v2002, %v1643
        %v2004 = vmax.f32 %v2003, %v1647
        %v2005 = vrot.slane %v2004, 4
        %v2006 = vmax.f32 %v2004, %v2005
        %v2007 = vrot.slane %v2006, 2
        %v2008 = vmax.f32 %v2006, %v2007
        %v2009 = vrot.slane %v2008, 1
        %v2010 = vmax.f32 %v2008, %v2009
        %v2011 = vmax.f32 %v1575, %v1579
        %v2012 = vmax.f32 %v2011, %v1585
        %v2013 = vmax.f32 %v2012, %v1589
        %v2014 = vmax.f32 %v2013, %v1595
        %v2015 = vmax.f32 %v2014, %v1599
        %v2016 = vmax.f32 %v2015, %v1605
        %v2017 = vmax.f32 %v2016, %v1609
        %v2018 = vmax.f32 %v2017, %v1615
        %v2019 = vmax.f32 %v2018, %v1619
        %v2020 = vmax.f32 %v2019, %v1625
        %v2021 = vmax.f32 %v2020, %v1629
        %v2022 = vmax.f32 %v2021, %v1635
        %v2023 = vmax.f32 %v2022, %v1639
        %v2024 = vmax.f32 %v2023, %v1645
        %v2025 = vmax.f32 %v2024, %v1649
        %v2026 = vrot.slane %v2025, 4
        %v2027 = vmax.f32 %v2025, %v2026
        %v2028 = vrot.slane %v2027, 2
        %v2029 = vmax.f32 %v2027, %v2028
        %v2030 = vrot.slane %v2029, 1
        %v2031 = vmax.f32 %v2029, %v2030
        %v2032 = vmax.f32 %v1686, %v1690
        %v2033 = vmax.f32 %v2032, %v1696
        %v2034 = vmax.f32 %v2033, %v1700
        %v2035 = vmax.f32 %v2034, %v1706
        %v2036 = vmax.f32 %v2035, %v1710
        %v2037 = vmax.f32 %v2036, %v1716
        %v2038 = vmax.f32 %v2037, %v1720
        %v2039 = vmax.f32 %v2038, %v1726
        %v2040 = vmax.f32 %v2039, %v1730
        %v2041 = vmax.f32 %v2040, %v1736
        %v2042 = vmax.f32 %v2041, %v1740
        %v2043 = vmax.f32 %v2042, %v1746
        %v2044 = vmax.f32 %v2043, %v1750
        %v2045 = vmax.f32 %v2044, %v1756
        %v2046 = vmax.f32 %v2045, %v1760
        %v2047 = vrot.slane %v2046, 4
        %v2048 = vmax.f32 %v2046, %v2047
        %v2049 = vrot.slane %v2048, 2
        %v2050 = vmax.f32 %v2048, %v2049
        %v2051 = vrot.slane %v2050, 1
        %v2052 = vmax.f32 %v2050, %v2051
        %v2053 = vmax.f32 %v1688, %v1692
        %v2054 = vmax.f32 %v2053, %v1698
        %v2055 = vmax.f32 %v2054, %v1702
        %v2056 = vmax.f32 %v2055, %v1708
        %v2057 = vmax.f32 %v2056, %v1712
        %v2058 = vmax.f32 %v2057, %v1718
        %v2059 = vmax.f32 %v2058, %v1722
        %v2060 = vmax.f32 %v2059, %v1728
        %v2061 = vmax.f32 %v2060, %v1732
        %v2062 = vmax.f32 %v2061, %v1738
        %v2063 = vmax.f32 %v2062, %v1742
        %v2064 = vmax.f32 %v2063, %v1748
        %v2065 = vmax.f32 %v2064, %v1752
        %v2066 = vmax.f32 %v2065, %v1758
        %v2067 = vmax.f32 %v2066, %v1762
        %v2068 = vrot.slane %v2067, 4
        %v2069 = vmax.f32 %v2067, %v2068
        %v2070 = vrot.slane %v2069, 2
        %v2071 = vmax.f32 %v2069, %v2070
        %v2072 = vrot.slane %v2071, 1
        %v2073 = vmax.f32 %v2071, %v2072
        %v2074 = vmax.f32 %v1799, %v1803
        %v2075 = vmax.f32 %v2074, %v1809
        %v2076 = vmax.f32 %v2075, %v1813
        %v2077 = vmax.f32 %v2076, %v1819
        %v2078 = vmax.f32 %v2077, %v1823
        %v2079 = vmax.f32 %v2078, %v1829
        %v2080 = vmax.f32 %v2079, %v1833
        %v2081 = vmax.f32 %v2080, %v1839
        %v2082 = vmax.f32 %v2081, %v1843
        %v2083 = vmax.f32 %v2082, %v1849
        %v2084 = vmax.f32 %v2083, %v1853
        %v2085 = vmax.f32 %v2084, %v1859
        %v2086 = vmax.f32 %v2085, %v1863
        %v2087 = vmax.f32 %v2086, %v1869
        %v2088 = vmax.f32 %v2087, %v1873
        %v2089 = vrot.slane %v2088, 4
        %v2090 = vmax.f32 %v2088, %v2089
        %v2091 = vrot.slane %v2090, 2
        %v2092 = vmax.f32 %v2090, %v2091
        %v2093 = vrot.slane %v2092, 1
        %v2094 = vmax.f32 %v2092, %v2093
        %v2095 = vmax.f32 %v1801, %v1805
        %v2096 = vmax.f32 %v2095, %v1811
        %v2097 = vmax.f32 %v2096, %v1815
        %v2098 = vmax.f32 %v2097, %v1821
        %v2099 = vmax.f32 %v2098, %v1825
        %v2100 = vmax.f32 %v2099, %v1831
        %v2101 = vmax.f32 %v2100, %v1835
        %v2102 = vmax.f32 %v2101, %v1841
        %v2103 = vmax.f32 %v2102, %v1845
        %v2104 = vmax.f32 %v2103, %v1851
        %v2105 = vmax.f32 %v2104, %v1855
        %v2106 = vmax.f32 %v2105, %v1861
        %v2107 = vmax.f32 %v2106, %v1865
        %v2108 = vmax.f32 %v2107, %v1871
        %v2109 = vmax.f32 %v2108, %v1875
        %v2110 = vrot.slane %v2109, 4
        %v2111 = vmax.f32 %v2109, %v2110
        %v2112 = vrot.slane %v2111, 2
        %v2113 = vmax.f32 %v2111, %v2112
        %v2114 = vrot.slane %v2113, 1
        %v2115 = vmax.f32 %v2113, %v2114
        %v2116 = vmax.f32 %v1912, %v1916
        %v2117 = vmax.f32 %v2116, %v1922
        %v2118 = vmax.f32 %v2117, %v1926
        %v2119 = vmax.f32 %v2118, %v1932
        %v2120 = vmax.f32 %v2119, %v1936
        %v2121 = vmax.f32 %v2120, %v1942
        %v2122 = vmax.f32 %v2121, %v1946
        %v2123 = vmax.f32 %v2122, %v1952
        %v2124 = vmax.f32 %v2123, %v1956
        %v2125 = vmax.f32 %v2124, %v1962
        %v2126 = vmax.f32 %v2125, %v1966
        %v2127 = vmax.f32 %v2126, %v1972
        %v2128 = vmax.f32 %v2127, %v1976
        %v2129 = vmax.f32 %v2128, %v1982
        %v2130 = vmax.f32 %v2129, %v1986
        %v2131 = vrot.slane %v2130, 4
        %v2132 = vmax.f32 %v2130, %v2131
        %v2133 = vrot.slane %v2132, 2
        %v2134 = vmax.f32 %v2132, %v2133
        %v2135 = vrot.slane %v2134, 1
        %v2136 = vmax.f32 %v2134, %v2135
        %v2137 = vmax.f32 %v1914, %v1918
        %v2138 = vmax.f32 %v2137, %v1924
        %v2139 = vmax.f32 %v2138, %v1928
        %v2140 = vmax.f32 %v2139, %v1934
        %v2141 = vmax.f32 %v2140, %v1938
        %v2142 = vmax.f32 %v2141, %v1944
        %v2143 = vmax.f32 %v2142, %v1948
        %v2144 = vmax.f32 %v2143, %v1954
        %v2145 = vmax.f32 %v2144, %v1958
        %v2146 = vmax.f32 %v2145, %v1964
        %v2147 = vmax.f32 %v2146, %v1968
        %v2148 = vmax.f32 %v2147, %v1974
        %v2149 = vmax.f32 %v2148, %v1978
        %v2150 = vmax.f32 %v2149, %v1984
        %v2151 = vmax.f32 %v2150, %v1988
        %v2152 = vrot.slane %v2151, 4
        %v2153 = vmax.f32 %v2151, %v2152
        %v2154 = vrot.slane %v2153, 2
        %v2155 = vmax.f32 %v2153, %v2154
        %v2156 = vrot.slane %v2155, 1
        %v2157 = vmax.f32 %v2155, %v2156
        %v2158 = vld [vmem:[%s524] sm:$0xff]
        %v2167 = vcombine.low %v2010, %v2031
        %v2168 = vcombine.low %v2052, %v2073
        %v2169 = vcombine.low %v2094, %v2115
        %v2170 = vcombine.low %v2136, %v2157
        %v2172 = vunpack.c.l.s4 1966171168
        %v2173 = vunpack.c.0.s8 %v2172
        %v2174 = vlaneseq
        %v2175 = vshrl.u32 %v2174, 7
        %v2176 = vsub.s32 %v2173, %v2175
        %v2177 = vrot.slane %v2167, %v2176
        %v2179 = vunpack.c.l.s4 1966171168
        %v2180 = vunpack.c.0.s8 %v2179
        %v2181 = vlaneseq
        %v2182 = vshrl.u32 %v2181, 7
        %v2183 = vsub.s32 %v2180, %v2182
        %v2184 = vrot.slane %v2168, %v2183
        %v2186 = vunpack.c.l.s4 1966171168
        %v2187 = vunpack.c.0.s8 %v2186
        %v2188 = vlaneseq
        %v2189 = vshrl.u32 %v2188, 7
        %v2190 = vsub.s32 %v2187, %v2189
        %v2191 = vrot.slane %v2169, %v2190
        %v2193 = vunpack.c.l.s4 1966171168
        %v2194 = vunpack.c.0.s8 %v2193
        %v2195 = vlaneseq
        %v2196 = vshrl.u32 %v2195, 7
        %v2197 = vsub.s32 %v2194, %v2196
        %v2198 = vrot.slane %v2170, %v2197
        %v2199 = vcombine.low %v2177, %v2184
        %v2200 = vcombine.low %v2191, %v2198
        %v2202 = vunpack.c.l.s4 1966171168
        %v2203 = vunpack.c.0.s8 %v2202
        %v2204 = vlaneseq
        %v2205 = vshrl.u32 %v2204, 7
        %v2206 = vsub.s32 %v2203, %v2205
        %v2207 = vrot.slane %v2199, %v2206
        %v2209 = vunpack.c.l.s4 1966171168
        %v2210 = vunpack.c.0.s8 %v2209
        %v2211 = vlaneseq
        %v2212 = vshrl.u32 %v2211, 7
        %v2213 = vsub.s32 %v2210, %v2212
        %v2214 = vrot.slane %v2200, %v2213
        %v2215 = vcombine.low %v2207, %v2214
        %v2217 = vmax.f32 %v2158, %v2215
        %2218 = vst [vmem:[%s524] sm:$0xff] %v2217
        %v2227 = vunpack.c.l.b16 %v970
        %v2228 = vunpack.c.h.b16 %v970
        %v2229 = vunpack.c.l.b16 %v971
        %v2230 = vunpack.c.h.b16 %v971
        %v2231 = vunpack.c.l.b16 %v972
        %v2232 = vunpack.c.h.b16 %v972
        %v2233 = vunpack.c.l.b16 %v973
        %v2234 = vunpack.c.h.b16 %v973
        %v2235 = vunpack.c.l.b16 %v974
        %v2236 = vunpack.c.h.b16 %v974
        %v2237 = vunpack.c.l.b16 %v975
        %v2238 = vunpack.c.h.b16 %v975
        %v2239 = vunpack.c.l.b16 %v976
        %v2240 = vunpack.c.h.b16 %v976
        %v2241 = vunpack.c.l.b16 %v977
        %v2242 = vunpack.c.h.b16 %v977
        %v2243 = vpack.c.b16 %v2227, %v2227
        %v2244 = vpack.c.b16 %v2228, %v2228
        %v2245 = vpack.c.b16 %v2229, %v2229
        %v2246 = vpack.c.b16 %v2230, %v2230
        %v2247 = vpack.c.b16 %v2231, %v2231
        %v2248 = vpack.c.b16 %v2232, %v2232
        %v2249 = vpack.c.b16 %v2233, %v2233
        %v2250 = vpack.c.b16 %v2234, %v2234
        %v2251 = vpack.c.b16 %v2235, %v2235
        %v2252 = vpack.c.b16 %v2236, %v2236
        %v2253 = vpack.c.b16 %v2237, %v2237
        %v2254 = vpack.c.b16 %v2238, %v2238
        %v2255 = vpack.c.b16 %v2239, %v2239
        %v2256 = vpack.c.b16 %v2240, %v2240
        %v2257 = vpack.c.b16 %v2241, %v2241
        %v2258 = vpack.c.b16 %v2242, %v2242
        %vm2275 = vcmask 519168
        %2276 = vst.msk [vmem:[%s531] sm:$0xf] %vm2275, %v2243
        %2277 = vst.msk [vmem:[%s531 + $0x4] sm:$0xf] %vm2275, %v2244
        %2278 = vst.msk [vmem:[%s531 + $0x8] sm:$0xf] %vm2275, %v2245
        %2279 = vst.msk [vmem:[%s531 + $0xc] sm:$0xf] %vm2275, %v2246
        %2280 = vst.msk [vmem:[%s531 + $0x10] sm:$0xf] %vm2275, %v2247
        %2281 = vst.msk [vmem:[%s531 + $0x14] sm:$0xf] %vm2275, %v2248
        %2282 = vst.msk [vmem:[%s531 + $0x18] sm:$0xf] %vm2275, %v2249
        %2283 = vst.msk [vmem:[%s531 + $0x1c] sm:$0xf] %vm2275, %v2250
        %2284 = vst.msk [vmem:[%s531 + $0x20] sm:$0xf] %vm2275, %v2251
        %2285 = vst.msk [vmem:[%s531 + $0x24] sm:$0xf] %vm2275, %v2252
        %2286 = vst.msk [vmem:[%s531 + $0x28] sm:$0xf] %vm2275, %v2253
        %2287 = vst.msk [vmem:[%s531 + $0x2c] sm:$0xf] %vm2275, %v2254
        %2288 = vst.msk [vmem:[%s531 + $0x30] sm:$0xf] %vm2275, %v2255
        %2289 = vst.msk [vmem:[%s531 + $0x34] sm:$0xf] %vm2275, %v2256
        %2290 = vst.msk [vmem:[%s531 + $0x38] sm:$0xf] %vm2275, %v2257
        %2291 = vst.msk [vmem:[%s531 + $0x3c] sm:$0xf] %vm2275, %v2258
        %p2292 = scmp.eq.s32.totalorder %s42, 1
        // Predicated region
        $region97: #{_lambda_.1} parent=55 // pred_check
          %p2293 = pneg %p2292
        $region98: #{_lambda_.1} parent=55 // pred_check_branch
          %2295 = sbr.rel (%p2293) target = $region100
        $region99: #{_lambda_.1} parent=55 // pred_region
          %v2296 = vld [vmem:[%s524] sm:$0xff]
          %v2297 = vld [vmem:[#allocation16] sm:$0xff]
          %v2298 = vadd.f32 %v2296, %v2297
          %v2299 = vtanh.pop %v2298
          %2300 = vst [vmem:[%s524] sm:$0xff] %v2299
        $region100: #{_lambda_.1} parent=55 // pred_fallthru
          _
        %s2301 = sand.u32 %s264, 1
        %s2302 = scalar_lea.sflag [#allocation4], %s2301
        %s2303 = sand.u32 %s264, 1
        %s2304 = smul.addr %s2303, 8
        %s2305 = scalar_lea.vmem [#allocation17], %s2304
        %s2306 = sand.u32 %s296, 1
        %s2307 = scalar_lea.sflag [#allocation19], %s2306
        %s2308 = sand.u32 %s296, 1
        %s2309 = smul.addr %s2308, 64
        %s2310 = scalar_lea.vmem [#allocation18], %s2309
        // Predicated region
        $region101: #{_lambda_.1} parent=55 // pred_check
          %p2311 = pneg %p274
        $region102: #{_lambda_.1} parent=55 // pred_check_branch
          %2313 = sbr.rel (%p2311) target = $region104
        $region103: #{_lambda_.1} parent=55 // pred_region
          %s2314 = sadd.s32 %s40, %s41
          %s2316 = ssub.s32 128, 128
          %2317 = vsyncadd %s2302, %s2316
          %s2318 = smul.addr %s2314, 8
          %s2319 = smul.addr %s2318, 16
          %s2320 = scalar_lea.hbm %s9, %s2319
          %s2322 = sshll.u32 %s2305, 4
          %s2323 = int_to_ptr.vmem [resolvable:$true] %s2322
          %2325 = dma.vmem_to_hbm [thread:$0]  %s2323, 128, %s2320, %s2302
        $region104: #{_lambda_.1} parent=55 // pred_fallthru
          _
        // Predicated region
        $region105: #{_lambda_.1} parent=55 // pred_check
          %p2326 = pneg %p306
        $region106: #{_lambda_.1} parent=55 // pred_check_branch
          %2328 = sbr.rel (%p2326) target = $region108
        $region107: #{_lambda_.1} parent=55 // pred_region
          %s2329 = smul.u32 %s41, 2
          %s2330 = sadd.s32 %s2329, %s42
          %s2331 = smul.u32 16, %s2330
          %s2333 = ssub.s32 1024, 1024
          %2334 = vsyncadd %s2307, %s2333
          %s2335 = smul.addr %s40, 32
          %s2336 = sadd.s32 %s2331, %s2335
          %s2337 = smul.addr %s2336, 64
          %s2338 = scalar_lea.hbm %s10, %s2337
          %s2339 = sshll.u32 %s2310, 4
          %s2340 = int_to_ptr.vmem [resolvable:$true] %s2339
          %2345 = dma.vmem_to_hbm [thread:$0]  %s2340, 1024, %s2338, %s2307, 64, 64, 4
        $region108: #{_lambda_.1} parent=55 // pred_fallthru
          _
      $region56: #{_lambda_.1} parent=5 // pred_fallthru
        _
      %p2346 = scmp.le.s32.totalorder 2, %s30
      // Predicated region
      $region109: #{_lambda_.1} parent=5 // pred_check
        %p2347 = pneg %p2346
      $region110: #{_lambda_.1} parent=5 // pred_check_branch
        %2349 = sbr.rel (%p2347) target = $region112
      $region111: #{_lambda_.1} parent=5 // pred_region
        %s2350 = ssub.s32 %s30, 2
        // Predicated region
        $region113: #{_lambda_.1} parent=111 // pred_check
          %p2351 = pneg %p280
        $region114: #{_lambda_.1} parent=111 // pred_check_branch
          %2353 = sbr.rel (%p2351) target = $region116
        $region115: #{_lambda_.1} parent=111 // pred_region
          %s2354 = sand.u32 %s265, 1
          %s2355 = scalar_lea.sflag [#allocation4], %s2354
          %s2356 = sand.u32 %s265, 1
          %s2357 = smul.addr %s2356, 8
          %s2358 = scalar_lea.vmem [#allocation17], %s2357
          %2359 = dma.done %s2355, 128
        $region116: #{_lambda_.1} parent=111 // pred_fallthru
          _
        // Predicated region
        $region117: #{_lambda_.1} parent=111 // pred_check
          %p2360 = pneg %p312
        $region118: #{_lambda_.1} parent=111 // pred_check_branch
          %2362 = sbr.rel (%p2360) target = $region120
        $region119: #{_lambda_.1} parent=111 // pred_region
          %s2363 = sand.u32 %s297, 1
          %s2364 = scalar_lea.sflag [#allocation19], %s2363
          %s2365 = sand.u32 %s297, 1
          %s2366 = smul.addr %s2365, 64
          %s2367 = scalar_lea.vmem [#allocation18], %s2366
          %2368 = dma.done %s2364, 1024
        $region120: #{_lambda_.1} parent=111 // pred_fallthru
          _
      $region112: #{_lambda_.1} parent=5 // pred_fallthru
        _
    $region6: #{_lambda_.1} parent=1 // loop_footer
      %s34 = sadd.s32 1, %s30
    $region7: #{_lambda_.1} parent=1 // loop_footer_branch
      %29 = sbr.rel target = $region3
    $region8: #{_lambda_.1} parent=1 // loop_exit
      _
    %2369 = vsyncpa [#allocation3], 1
    %s2370 = scalar_lea.sflag [#allocation3], 1
    %2371 = vsyncpa %s2370, 1
    %2372 = vsyncpa [#allocation6], 1
    %2373 = vsyncpa [#allocation9], 1
    %2374 = vsyncpa [#allocation12], 1
    %2375 = vsyncpa [#allocation15], 1
    %2376 = vsyncpa [#allocation4], 1
    %s2377 = scalar_lea.sflag [#allocation4], 1
    %2378 = vsyncpa %s2377, 1
    %2379 = vsyncpa [#allocation19], 1
    %s2380 = scalar_lea.sflag [#allocation19], 1
    %2381 = vsyncpa %s2380, 1

</llo_original>
